<compile_context>
chip_gen: v5e
topology: v5e:2x2
jax: 0.10.0
libtpu: 0.0.40
codegen_flags: <defaults>
</compile_context>

<pallas_src>
import functools

import jax
import jax.numpy as jnp
from jax.experimental import pallas as pl
from jax.experimental.pallas import tpu as pltpu


# ----------------------------- helpers ---------------------------------------

def compute_seq_len(input_len: int, kernel_size: int, stride: int) -> int:
    # Integer floor division (hygiene fix vs. float division + int()).
    return (input_len - kernel_size) // stride + 1


# ------------------------- fused Pallas kernel --------------------------------

def _cold_cnn_fused_kernel(*refs, kernel_sizes, cnn_stride, pool_stride,
                           conv_lens, pool_lens):
    """Entire ColdCNN forward in one kernel.

    refs layout (n = number of conv branches):
      refs[0]            : x        (B, L, C)       -- NLC activations
      refs[1 : 1+n]      : conv w   (K, C, O)       -- per branch
      refs[1+n : 1+2n]   : conv b   (1, 1, O)       -- per branch
      refs[1+2n : ]      : fc1_w (Lagg, O, F), fc1_b (1, F),
                           fc2_w (1, F), fc2_b (1, 1), out (B, 1)
    """
    n = len(kernel_sizes)
    x_ref = refs[0]
    conv_w_refs = refs[1:1 + n]
    conv_b_refs = refs[1 + n:1 + 2 * n]
    fc1_w_ref, fc1_b_ref, fc2_w_ref, fc2_b_ref, o_ref = refs[1 + 2 * n:]

    x = x_ref[...]                                   # (B, L, C)

    # fc1 accumulator seeded with the bias; pooled features are contracted into it
    # as soon as they are produced, so the concat/flatten never materializes.
    h = fc1_b_ref[...]                               # (1, F) -> broadcasts to (B, F)

    off = 0
    for i, K in enumerate(kernel_sizes):
        Lc, Lp = conv_lens[i], pool_lens[i]
        w = conv_w_refs[i][...]                      # (K, C, O)

        # Conv1d: accumulate K shifted (B, Lc, C) x (C, O) contractions (f32 acc).
        y = conv_b_refs[i][...]                      # (1, 1, O), broadcast-added
        for k in range(K):
            xs = x[:, k: k + cnn_stride * Lc: cnn_stride, :]          # (B, Lc, C)
            y = y + jnp.einsum('blc,co->blo', xs, w[k],
                               preferred_element_type=jnp.float32)
        y = jnp.maximum(y, 0.0)                      # ReLU

        # MaxPool1d(K, pool_stride) fused with the flatten + fc1 contraction:
        # pooled position p contributes pooled_p (B, O) @ fc1_w[off + p] (O, F).
        # (fc1_w rows were permuted at init to absorb PyTorch's channel-major
        #  flatten order, so this is exactly fc1(flatten(cat(...))).)
        for p in range(Lp):
            win = y[:, p * pool_stride: p * pool_stride + K, :]       # (B, K, O)
            pooled = jnp.max(win, axis=1)                             # (B, O)
            h = h + jnp.dot(pooled, fc1_w_ref[off + p],
                            preferred_element_type=jnp.float32)
        off += Lp

    # fc2 has a single output unit: VPU multiply + lane reduction beats a 1-column
    # MXU matmul (avoids masked result pops).  Then sigmoid.
    # TODO(synk): Dropout(p1)/Dropout(p2) are stochastic in train mode; identity here.
    z = jnp.sum(h * fc2_w_ref[...], axis=-1, keepdims=True) + fc2_b_ref[...]
    o_ref[...] = (1.0 / (1.0 + jnp.exp(-z))).astype(o_ref.dtype)


_VMEM_SPEC = pl.BlockSpec(memory_space=pltpu.MemorySpace.VMEM)


@functools.partial(jax.jit, static_argnames=(
    'kernel_sizes', 'cnn_stride', 'pool_stride', 'conv_lens', 'pool_lens'))
def cold_cnn_forward(x_ncl, params, *, kernel_sizes, cnn_stride, pool_stride,
                     conv_lens, pool_lens):
    B = x_ncl.shape[0]
    # Single tiny layout op: NCL -> NLC so the channel contraction is lane-dim.
    x_blc = jnp.transpose(x_ncl, (0, 2, 1))
    kernel = functools.partial(
        _cold_cnn_fused_kernel,
        kernel_sizes=kernel_sizes, cnn_stride=cnn_stride, pool_stride=pool_stride,
        conv_lens=conv_lens, pool_lens=pool_lens)
    inputs = [x_blc]
    inputs += [params[f'conv{k}_w'] for k in kernel_sizes]
    inputs += [params[f'conv{k}_b'] for k in kernel_sizes]
    inputs += [params['fc1_w'], params['fc1_b'], params['fc2_w'], params['fc2_b']]
    return pl.pallas_call(
        kernel,
        out_shape=jax.ShapeDtypeStruct((B, 1), jnp.float32),
        in_specs=[_VMEM_SPEC] * len(inputs),
        out_specs=_VMEM_SPEC,
    )(*inputs)


# --------------------------- model wrapper -----------------------------------

class ColdCNNPallas:
    def __init__(self, hyparams, in_channels, seq_len, key):
        self.kernel_sizes = tuple(hyparams['kernel_sizes'])
        self.cnn_stride = int(hyparams['cnn_stride'])
        self.pooling_stride = int(hyparams['pooling_stride'])
        self.out_channels = int(hyparams['out_channels'])
        self.fc_features = int(hyparams['fc_features'])

        C, O = in_channels, self.out_channels
        conv_lens, pool_lens = [], []
        for ks in self.kernel_sizes:
            cl = compute_seq_len(seq_len, ks, self.cnn_stride)
            conv_lens.append(cl)
            pool_lens.append(compute_seq_len(cl, ks, self.pooling_stride))
        self.conv_lens = tuple(conv_lens)
        self.pool_lens = tuple(pool_lens)
        self.agg_seq_len = sum(pool_lens)
        lagg = self.agg_seq_len

        keys = jax.random.split(key, 2 * len(self.kernel_sizes) + 4)
        ki = 0
        self.torch_params = {}   # PyTorch layouts (used by the pure-JAX reference)
        self.params = {}         # kernel layouts (what the fused Pallas kernel eats)

        for ks in self.kernel_sizes:
            bound = (C * ks) ** -0.5
            w = jax.random.uniform(keys[ki], (O, C, ks), jnp.float32, -bound, bound); ki += 1
            b = jax.random.uniform(keys[ki], (O,), jnp.float32, -bound, bound); ki += 1
            self.torch_params[f'conv{ks}_w'] = w                    # (O, C, K)
            self.torch_params[f'conv{ks}_b'] = b                    # (O,)
            # Kernel layout: (K, C, O) so tap k is a (C, O) lane-dim contraction.
            self.params[f'conv{ks}_w'] = jnp.transpose(w, (2, 1, 0))
            self.params[f'conv{ks}_b'] = b.reshape(1, 1, O)

        fc1_in = O * lagg
        bound = fc1_in ** -0.5
        w1 = jax.random.uniform(keys[ki], (self.fc_features, fc1_in), jnp.float32,
                                -bound, bound); ki += 1
        b1 = jax.random.uniform(keys[ki], (self.fc_features,), jnp.float32,
                                -bound, bound); ki += 1
        bound = self.fc_features ** -0.5
        w2 = jax.random.uniform(keys[ki], (1, self.fc_features), jnp.float32,
                                -bound, bound); ki += 1
        b2 = jax.random.uniform(keys[ki], (1,), jnp.float32, -bound, bound); ki += 1
        self.torch_params.update(fc1_w=w1, fc1_b=b1, fc2_w=w2, fc2_b=b2)

        # Absorb PyTorch's channel-major flatten (feature = o * Lagg + p) into the
        # fc1 weight at init (free at runtime): kernel order is position-major
        # (feature = p * O + o), stored as a (Lagg, O, F) stack of per-position slabs.
        perm = (jnp.arange(O)[None, :] * lagg + jnp.arange(lagg)[:, None]).reshape(-1)
        self.params['fc1_w'] = jnp.transpose(w1)[perm].reshape(lagg, O, self.fc_features)
        self.params['fc1_b'] = b1.reshape(1, self.fc_features)
        self.params['fc2_w'] = w2.reshape(1, self.fc_features)   # row vector for VPU reduce
        self.params['fc2_b'] = b2.reshape(1, 1)

    def __call__(self, batch_ncl):
        # batch_ncl: (B, C, L) -- PyTorch Conv1d layout.
        return cold_cnn_forward(
            batch_ncl, self.params,
            kernel_sizes=self.kernel_sizes, cnn_stride=self.cnn_stride,
            pool_stride=self.pooling_stride,
            conv_lens=self.conv_lens, pool_lens=self.pool_lens)


# --------------------- pure-JAX reference (PyTorch emulation) -----------------

def reference_forward(x_ncl, tparams, *, kernel_sizes, cnn_stride, pool_stride):
    B, C, L = x_ncl.shape
    outs = []
    for ks in kernel_sizes:
        w = tparams[f'conv{ks}_w']                               # (O, C, K)
        b = tparams[f'conv{ks}_b']                               # (O,)
        conv_len = compute_seq_len(L, ks, cnn_stride)
        cols = [jnp.einsum('bck,ock->bo',
                           x_ncl[:, :, l * cnn_stride: l * cnn_stride + ks], w)
                for l in range(conv_len)]
        y = jnp.stack(cols, axis=-1) + b[None, :, None]          # (B, O, conv_len)
        y = jnp.maximum(y, 0.0)
        pool_len = compute_seq_len(conv_len, ks, pool_stride)
        pooled = [jnp.max(y[:, :, p * pool_stride: p * pool_stride + ks], axis=-1)
                  for p in range(pool_len)]
        outs.append(jnp.stack(pooled, axis=-1))                  # (B, O, pool_len)
    xcat = jnp.concatenate(outs, axis=2)                         # (B, O, Lagg)
    xf = xcat.reshape(B, -1)                                     # channel-major flatten
    h = xf @ tparams['fc1_w'].T + tparams['fc1_b']
    z = h @ tparams['fc2_w'].T + tparams['fc2_b']
    return jax.nn.sigmoid(z)


# ------------------------------- main -----------------------------------------

if __name__ == "__main__":
    hyparams = dict(
        kernel_sizes=[3, 5],
        cnn_stride=1,
        pooling_stride=2,
        out_channels=8,
        fc_features=32,
        dropouts=dict(p1=0.25, p2=0.25),   # identity at inference
    )
    B, C_in, L = 2, 4, 16

    key = jax.random.PRNGKey(0)
    k_model, k_data = jax.random.split(key)
    model = ColdCNNPallas(hyparams, in_channels=C_in, seq_len=L, key=k_model)

    x = jax.random.normal(k_data, (B, C_in, L), jnp.float32)     # NCL, PyTorch layout
    out = jax.block_until_ready(model(x))
    assert out.shape == (B, 1)

    ref = jax.block_until_ready(reference_forward(
        x, model.torch_params, kernel_sizes=model.kernel_sizes,
        cnn_stride=model.cnn_stride, pool_stride=model.pooling_stride))
    assert jnp.allclose(out, ref, rtol=1e-5, atol=1e-5), (out, ref)
    assert bool(jnp.all((out >= 0.0) & (out <= 1.0)))
    print("KERNEL_OK")
</pallas_src>

<mosaic_0001>
module attributes {stable_mosaic.version = 11 : i64} {
  func.func @_cold_cnn_fused_kernel(%arg0: memref<2x16x4xf32, #tpu.memory_space<vmem>>, %arg1: memref<3x4x8xf32, #tpu.memory_space<vmem>>, %arg2: memref<5x4x8xf32, #tpu.memory_space<vmem>>, %arg3: memref<1x1x8xf32, #tpu.memory_space<vmem>>, %arg4: memref<1x1x8xf32, #tpu.memory_space<vmem>>, %arg5: memref<10x8x32xf32, #tpu.memory_space<vmem>>, %arg6: memref<1x32xf32, #tpu.memory_space<vmem>>, %arg7: memref<1x32xf32, #tpu.memory_space<vmem>>, %arg8: memref<1x1xf32, #tpu.memory_space<vmem>>, %arg9: memref<2x1xf32, #tpu.memory_space<vmem>>) attributes {dimension_semantics = [], scalar_prefetch = 0 : i64, scratch_operands = 0 : i64, tpu.core_type = #tpu.core_type<tc>} {
    %c0 = arith.constant 0 : index
    %c0_0 = arith.constant 0 : index
    %c0_1 = arith.constant 0 : index
    %0 = vector.load %arg0[%c0, %c0_0, %c0_1] : memref<2x16x4xf32, #tpu.memory_space<vmem>>, vector<2x16x4xf32>
    %c0_2 = arith.constant 0 : index
    %c0_3 = arith.constant 0 : index
    %1 = vector.load %arg6[%c0_2, %c0_3] : memref<1x32xf32, #tpu.memory_space<vmem>>, vector<1x32xf32>
    %c0_4 = arith.constant 0 : index
    %c0_5 = arith.constant 0 : index
    %c0_6 = arith.constant 0 : index
    %2 = vector.load %arg1[%c0_4, %c0_5, %c0_6] : memref<3x4x8xf32, #tpu.memory_space<vmem>>, vector<3x4x8xf32>
    %c0_7 = arith.constant 0 : index
    %c0_8 = arith.constant 0 : index
    %c0_9 = arith.constant 0 : index
    %3 = vector.load %arg3[%c0_7, %c0_8, %c0_9] : memref<1x1x8xf32, #tpu.memory_space<vmem>>, vector<1x1x8xf32>
    %4 = vector.extract_strided_slice %0 {offsets = [0, 0, 0], sizes = [2, 14, 4], strides = [1, 1, 1]} : vector<2x16x4xf32> to vector<2x14x4xf32>
    %5 = vector.extract_strided_slice %2 {offsets = [0, 0, 0], sizes = [1, 4, 8], strides = [1, 1, 1]} : vector<3x4x8xf32> to vector<1x4x8xf32>
    %6 = vector.shape_cast %5 : vector<1x4x8xf32> to vector<4x8xf32>
    "tpu.trace_start"() <{level = 10 : i32, message = "blc,co->blo"}> : () -> ()
    %cst = arith.constant dense<0.000000e+00> : vector<2x14x8xf32>
    %7 = tpu.matmul %4, %6, %cst {dimension_numbers = #tpu.dot_dimension_numbers<[2], [0], [0, 1], [1], [0, 0, 0, 1, 1, 1], [], []>} : vector<2x14x4xf32>, vector<4x8xf32>, vector<2x14x8xf32> -> vector<2x14x8xf32>
    "tpu.trace_stop"() : () -> ()
    %8 = vector.broadcast %3 : vector<1x1x8xf32> to vector<2x14x8xf32>
    %9 = arith.addf %8, %7 : vector<2x14x8xf32>
    %10 = vector.extract_strided_slice %0 {offsets = [0, 1, 0], sizes = [2, 14, 4], strides = [1, 1, 1]} : vector<2x16x4xf32> to vector<2x14x4xf32>
    %11 = vector.extract_strided_slice %2 {offsets = [1, 0, 0], sizes = [1, 4, 8], strides = [1, 1, 1]} : vector<3x4x8xf32> to vector<1x4x8xf32>
    %12 = vector.shape_cast %11 : vector<1x4x8xf32> to vector<4x8xf32>
    "tpu.trace_start"() <{level = 10 : i32, message = "blc,co->blo"}> : () -> ()
    %cst_10 = arith.constant dense<0.000000e+00> : vector<2x14x8xf32>
    %13 = tpu.matmul %10, %12, %cst_10 {dimension_numbers = #tpu.dot_dimension_numbers<[2], [0], [0, 1], [1], [0, 0, 0, 1, 1, 1], [], []>} : vector<2x14x4xf32>, vector<4x8xf32>, vector<2x14x8xf32> -> vector<2x14x8xf32>
    "tpu.trace_stop"() : () -> ()
    %14 = arith.addf %9, %13 : vector<2x14x8xf32>
    %15 = vector.extract_strided_slice %0 {offsets = [0, 2, 0], sizes = [2, 14, 4], strides = [1, 1, 1]} : vector<2x16x4xf32> to vector<2x14x4xf32>
    %16 = vector.extract_strided_slice %2 {offsets = [2, 0, 0], sizes = [1, 4, 8], strides = [1, 1, 1]} : vector<3x4x8xf32> to vector<1x4x8xf32>
    %17 = vector.shape_cast %16 : vector<1x4x8xf32> to vector<4x8xf32>
    "tpu.trace_start"() <{level = 10 : i32, message = "blc,co->blo"}> : () -> ()
    %cst_11 = arith.constant dense<0.000000e+00> : vector<2x14x8xf32>
    %18 = tpu.matmul %15, %17, %cst_11 {dimension_numbers = #tpu.dot_dimension_numbers<[2], [0], [0, 1], [1], [0, 0, 0, 1, 1, 1], [], []>} : vector<2x14x4xf32>, vector<4x8xf32>, vector<2x14x8xf32> -> vector<2x14x8xf32>
    "tpu.trace_stop"() : () -> ()
    %19 = arith.addf %14, %18 : vector<2x14x8xf32>
    %cst_12 = arith.constant 0.000000e+00 : f32
    %20 = vector.broadcast %cst_12 : f32 to vector<2x14x8xf32>
    %21 = arith.maximumf %19, %20 : vector<2x14x8xf32>
    %22 = vector.extract_strided_slice %21 {offsets = [0, 0, 0], sizes = [2, 3, 8], strides = [1, 1, 1]} : vector<2x14x8xf32> to vector<2x3x8xf32>
    %cst_13 = arith.constant dense<0xFF800000> : vector<2x8xf32>
    %23 = vector.multi_reduction <maximumf>, %22, %cst_13 [1] : vector<2x3x8xf32> to vector<2x8xf32>
    %c0_14 = arith.constant 0 : index
    %c0_15 = arith.constant 0 : index
    %c0_16 = arith.constant 0 : index
    %24 = vector.load %arg5[%c0_14, %c0_15, %c0_16] : memref<10x8x32xf32, #tpu.memory_space<vmem>>, vector<1x8x32xf32>
    %25 = vector.shape_cast %24 : vector<1x8x32xf32> to vector<8x32xf32>
    %cst_17 = arith.constant dense<0.000000e+00> : vector<2x32xf32>
    %26 = tpu.matmul %23, %25, %cst_17 {dimension_numbers = #tpu.dot_dimension_numbers<[1], [0], [0], [1], [0, 0, 1, 1], [], []>} : vector<2x8xf32>, vector<8x32xf32>, vector<2x32xf32> -> vector<2x32xf32>
    %27 = vector.broadcast %1 : vector<1x32xf32> to vector<2x32xf32>
    %28 = arith.addf %27, %26 : vector<2x32xf32>
    %29 = vector.extract_strided_slice %21 {offsets = [0, 2, 0], sizes = [2, 3, 8], strides = [1, 1, 1]} : vector<2x14x8xf32> to vector<2x3x8xf32>
    %cst_18 = arith.constant dense<0xFF800000> : vector<2x8xf32>
    %30 = vector.multi_reduction <maximumf>, %29, %cst_18 [1] : vector<2x3x8xf32> to vector<2x8xf32>
    %c1 = arith.constant 1 : index
    %c0_19 = arith.constant 0 : index
    %c0_20 = arith.constant 0 : index
    %31 = vector.load %arg5[%c1, %c0_19, %c0_20] : memref<10x8x32xf32, #tpu.memory_space<vmem>>, vector<1x8x32xf32>
    %32 = vector.shape_cast %31 : vector<1x8x32xf32> to vector<8x32xf32>
    %cst_21 = arith.constant dense<0.000000e+00> : vector<2x32xf32>
    %33 = tpu.matmul %30, %32, %cst_21 {dimension_numbers = #tpu.dot_dimension_numbers<[1], [0], [0], [1], [0, 0, 1, 1], [], []>} : vector<2x8xf32>, vector<8x32xf32>, vector<2x32xf32> -> vector<2x32xf32>
    %34 = arith.addf %28, %33 : vector<2x32xf32>
    %35 = vector.extract_strided_slice %21 {offsets = [0, 4, 0], sizes = [2, 3, 8], strides = [1, 1, 1]} : vector<2x14x8xf32> to vector<2x3x8xf32>
    %cst_22 = arith.constant dense<0xFF800000> : vector<2x8xf32>
    %36 = vector.multi_reduction <maximumf>, %35, %cst_22 [1] : vector<2x3x8xf32> to vector<2x8xf32>
    %c2 = arith.constant 2 : index
    %c0_23 = arith.constant 0 : index
    %c0_24 = arith.constant 0 : index
    %37 = vector.load %arg5[%c2, %c0_23, %c0_24] : memref<10x8x32xf32, #tpu.memory_space<vmem>>, vector<1x8x32xf32>
    %38 = vector.shape_cast %37 : vector<1x8x32xf32> to vector<8x32xf32>
    %cst_25 = arith.constant dense<0.000000e+00> : vector<2x32xf32>
    %39 = tpu.matmul %36, %38, %cst_25 {dimension_numbers = #tpu.dot_dimension_numbers<[1], [0], [0], [1], [0, 0, 1, 1], [], []>} : vector<2x8xf32>, vector<8x32xf32>, vector<2x32xf32> -> vector<2x32xf32>
    %40 = arith.addf %34, %39 : vector<2x32xf32>
    %41 = vector.extract_strided_slice %21 {offsets = [0, 6, 0], sizes = [2, 3, 8], strides = [1, 1, 1]} : vector<2x14x8xf32> to vector<2x3x8xf32>
    %cst_26 = arith.constant dense<0xFF800000> : vector<2x8xf32>
    %42 = vector.multi_reduction <maximumf>, %41, %cst_26 [1] : vector<2x3x8xf32> to vector<2x8xf32>
    %c3 = arith.constant 3 : index
    %c0_27 = arith.constant 0 : index
    %c0_28 = arith.constant 0 : index
    %43 = vector.load %arg5[%c3, %c0_27, %c0_28] : memref<10x8x32xf32, #tpu.memory_space<vmem>>, vector<1x8x32xf32>
    %44 = vector.shape_cast %43 : vector<1x8x32xf32> to vector<8x32xf32>
    %cst_29 = arith.constant dense<0.000000e+00> : vector<2x32xf32>
    %45 = tpu.matmul %42, %44, %cst_29 {dimension_numbers = #tpu.dot_dimension_numbers<[1], [0], [0], [1], [0, 0, 1, 1], [], []>} : vector<2x8xf32>, vector<8x32xf32>, vector<2x32xf32> -> vector<2x32xf32>
    %46 = arith.addf %40, %45 : vector<2x32xf32>
    %47 = vector.extract_strided_slice %21 {offsets = [0, 8, 0], sizes = [2, 3, 8], strides = [1, 1, 1]} : vector<2x14x8xf32> to vector<2x3x8xf32>
    %cst_30 = arith.constant dense<0xFF800000> : vector<2x8xf32>
    %48 = vector.multi_reduction <maximumf>, %47, %cst_30 [1] : vector<2x3x8xf32> to vector<2x8xf32>
    %c4 = arith.constant 4 : index
    %c0_31 = arith.constant 0 : index
    %c0_32 = arith.constant 0 : index
    %49 = vector.load %arg5[%c4, %c0_31, %c0_32] : memref<10x8x32xf32, #tpu.memory_space<vmem>>, vector<1x8x32xf32>
    %50 = vector.shape_cast %49 : vector<1x8x32xf32> to vector<8x32xf32>
    %cst_33 = arith.constant dense<0.000000e+00> : vector<2x32xf32>
    %51 = tpu.matmul %48, %50, %cst_33 {dimension_numbers = #tpu.dot_dimension_numbers<[1], [0], [0], [1], [0, 0, 1, 1], [], []>} : vector<2x8xf32>, vector<8x32xf32>, vector<2x32xf32> -> vector<2x32xf32>
    %52 = arith.addf %46, %51 : vector<2x32xf32>
    %53 = vector.extract_strided_slice %21 {offsets = [0, 10, 0], sizes = [2, 3, 8], strides = [1, 1, 1]} : vector<2x14x8xf32> to vector<2x3x8xf32>
    %cst_34 = arith.constant dense<0xFF800000> : vector<2x8xf32>
    %54 = vector.multi_reduction <maximumf>, %53, %cst_34 [1] : vector<2x3x8xf32> to vector<2x8xf32>
    %c5 = arith.constant 5 : index
    %c0_35 = arith.constant 0 : index
    %c0_36 = arith.constant 0 : index
    %55 = vector.load %arg5[%c5, %c0_35, %c0_36] : memref<10x8x32xf32, #tpu.memory_space<vmem>>, vector<1x8x32xf32>
    %56 = vector.shape_cast %55 : vector<1x8x32xf32> to vector<8x32xf32>
    %cst_37 = arith.constant dense<0.000000e+00> : vector<2x32xf32>
    %57 = tpu.matmul %54, %56, %cst_37 {dimension_numbers = #tpu.dot_dimension_numbers<[1], [0], [0], [1], [0, 0, 1, 1], [], []>} : vector<2x8xf32>, vector<8x32xf32>, vector<2x32xf32> -> vector<2x32xf32>
    %58 = arith.addf %52, %57 : vector<2x32xf32>
    %c0_38 = arith.constant 0 : index
    %c0_39 = arith.constant 0 : index
    %c0_40 = arith.constant 0 : index
    %59 = vector.load %arg2[%c0_38, %c0_39, %c0_40] : memref<5x4x8xf32, #tpu.memory_space<vmem>>, vector<5x4x8xf32>
    %c0_41 = arith.constant 0 : index
    %c0_42 = arith.constant 0 : index
    %c0_43 = arith.constant 0 : index
    %60 = vector.load %arg4[%c0_41, %c0_42, %c0_43] : memref<1x1x8xf32, #tpu.memory_space<vmem>>, vector<1x1x8xf32>
    %61 = vector.extract_strided_slice %0 {offsets = [0, 0, 0], sizes = [2, 12, 4], strides = [1, 1, 1]} : vector<2x16x4xf32> to vector<2x12x4xf32>
    %62 = vector.extract_strided_slice %59 {offsets = [0, 0, 0], sizes = [1, 4, 8], strides = [1, 1, 1]} : vector<5x4x8xf32> to vector<1x4x8xf32>
    %63 = vector.shape_cast %62 : vector<1x4x8xf32> to vector<4x8xf32>
    "tpu.trace_start"() <{level = 10 : i32, message = "blc,co->blo"}> : () -> ()
    %cst_44 = arith.constant dense<0.000000e+00> : vector<2x12x8xf32>
    %64 = tpu.matmul %61, %63, %cst_44 {dimension_numbers = #tpu.dot_dimension_numbers<[2], [0], [0, 1], [1], [0, 0, 0, 1, 1, 1], [], []>} : vector<2x12x4xf32>, vector<4x8xf32>, vector<2x12x8xf32> -> vector<2x12x8xf32>
    "tpu.trace_stop"() : () -> ()
    %65 = vector.broadcast %60 : vector<1x1x8xf32> to vector<2x12x8xf32>
    %66 = arith.addf %65, %64 : vector<2x12x8xf32>
    %67 = vector.extract_strided_slice %0 {offsets = [0, 1, 0], sizes = [2, 12, 4], strides = [1, 1, 1]} : vector<2x16x4xf32> to vector<2x12x4xf32>
    %68 = vector.extract_strided_slice %59 {offsets = [1, 0, 0], sizes = [1, 4, 8], strides = [1, 1, 1]} : vector<5x4x8xf32> to vector<1x4x8xf32>
    %69 = vector.shape_cast %68 : vector<1x4x8xf32> to vector<4x8xf32>
    "tpu.trace_start"() <{level = 10 : i32, message = "blc,co->blo"}> : () -> ()
    %cst_45 = arith.constant dense<0.000000e+00> : vector<2x12x8xf32>
    %70 = tpu.matmul %67, %69, %cst_45 {dimension_numbers = #tpu.dot_dimension_numbers<[2], [0], [0, 1], [1], [0, 0, 0, 1, 1, 1], [], []>} : vector<2x12x4xf32>, vector<4x8xf32>, vector<2x12x8xf32> -> vector<2x12x8xf32>
    "tpu.trace_stop"() : () -> ()
    %71 = arith.addf %66, %70 : vector<2x12x8xf32>
    %72 = vector.extract_strided_slice %0 {offsets = [0, 2, 0], sizes = [2, 12, 4], strides = [1, 1, 1]} : vector<2x16x4xf32> to vector<2x12x4xf32>
    %73 = vector.extract_strided_slice %59 {offsets = [2, 0, 0], sizes = [1, 4, 8], strides = [1, 1, 1]} : vector<5x4x8xf32> to vector<1x4x8xf32>
    %74 = vector.shape_cast %73 : vector<1x4x8xf32> to vector<4x8xf32>
    "tpu.trace_start"() <{level = 10 : i32, message = "blc,co->blo"}> : () -> ()
    %cst_46 = arith.constant dense<0.000000e+00> : vector<2x12x8xf32>
    %75 = tpu.matmul %72, %74, %cst_46 {dimension_numbers = #tpu.dot_dimension_numbers<[2], [0], [0, 1], [1], [0, 0, 0, 1, 1, 1], [], []>} : vector<2x12x4xf32>, vector<4x8xf32>, vector<2x12x8xf32> -> vector<2x12x8xf32>
    "tpu.trace_stop"() : () -> ()
    %76 = arith.addf %71, %75 : vector<2x12x8xf32>
    %77 = vector.extract_strided_slice %0 {offsets = [0, 3, 0], sizes = [2, 12, 4], strides = [1, 1, 1]} : vector<2x16x4xf32> to vector<2x12x4xf32>
    %78 = vector.extract_strided_slice %59 {offsets = [3, 0, 0], sizes = [1, 4, 8], strides = [1, 1, 1]} : vector<5x4x8xf32> to vector<1x4x8xf32>
    %79 = vector.shape_cast %78 : vector<1x4x8xf32> to vector<4x8xf32>
    "tpu.trace_start"() <{level = 10 : i32, message = "blc,co->blo"}> : () -> ()
    %cst_47 = arith.constant dense<0.000000e+00> : vector<2x12x8xf32>
    %80 = tpu.matmul %77, %79, %cst_47 {dimension_numbers = #tpu.dot_dimension_numbers<[2], [0], [0, 1], [1], [0, 0, 0, 1, 1, 1], [], []>} : vector<2x12x4xf32>, vector<4x8xf32>, vector<2x12x8xf32> -> vector<2x12x8xf32>
    "tpu.trace_stop"() : () -> ()
    %81 = arith.addf %76, %80 : vector<2x12x8xf32>
    %82 = vector.extract_strided_slice %0 {offsets = [0, 4, 0], sizes = [2, 12, 4], strides = [1, 1, 1]} : vector<2x16x4xf32> to vector<2x12x4xf32>
    %83 = vector.extract_strided_slice %59 {offsets = [4, 0, 0], sizes = [1, 4, 8], strides = [1, 1, 1]} : vector<5x4x8xf32> to vector<1x4x8xf32>
    %84 = vector.shape_cast %83 : vector<1x4x8xf32> to vector<4x8xf32>
    "tpu.trace_start"() <{level = 10 : i32, message = "blc,co->blo"}> : () -> ()
    %cst_48 = arith.constant dense<0.000000e+00> : vector<2x12x8xf32>
    %85 = tpu.matmul %82, %84, %cst_48 {dimension_numbers = #tpu.dot_dimension_numbers<[2], [0], [0, 1], [1], [0, 0, 0, 1, 1, 1], [], []>} : vector<2x12x4xf32>, vector<4x8xf32>, vector<2x12x8xf32> -> vector<2x12x8xf32>
    "tpu.trace_stop"() : () -> ()
    %86 = arith.addf %81, %85 : vector<2x12x8xf32>
    %cst_49 = arith.constant 0.000000e+00 : f32
    %87 = vector.broadcast %cst_49 : f32 to vector<2x12x8xf32>
    %88 = arith.maximumf %86, %87 : vector<2x12x8xf32>
    %89 = vector.extract_strided_slice %88 {offsets = [0, 0, 0], sizes = [2, 5, 8], strides = [1, 1, 1]} : vector<2x12x8xf32> to vector<2x5x8xf32>
    %cst_50 = arith.constant dense<0xFF800000> : vector<2x8xf32>
    %90 = vector.multi_reduction <maximumf>, %89, %cst_50 [1] : vector<2x5x8xf32> to vector<2x8xf32>
    %c6 = arith.constant 6 : index
    %c0_51 = arith.constant 0 : index
    %c0_52 = arith.constant 0 : index
    %91 = vector.load %arg5[%c6, %c0_51, %c0_52] : memref<10x8x32xf32, #tpu.memory_space<vmem>>, vector<1x8x32xf32>
    %92 = vector.shape_cast %91 : vector<1x8x32xf32> to vector<8x32xf32>
    %cst_53 = arith.constant dense<0.000000e+00> : vector<2x32xf32>
    %93 = tpu.matmul %90, %92, %cst_53 {dimension_numbers = #tpu.dot_dimension_numbers<[1], [0], [0], [1], [0, 0, 1, 1], [], []>} : vector<2x8xf32>, vector<8x32xf32>, vector<2x32xf32> -> vector<2x32xf32>
    %94 = arith.addf %58, %93 : vector<2x32xf32>
    %95 = vector.extract_strided_slice %88 {offsets = [0, 2, 0], sizes = [2, 5, 8], strides = [1, 1, 1]} : vector<2x12x8xf32> to vector<2x5x8xf32>
    %cst_54 = arith.constant dense<0xFF800000> : vector<2x8xf32>
    %96 = vector.multi_reduction <maximumf>, %95, %cst_54 [1] : vector<2x5x8xf32> to vector<2x8xf32>
    %c7 = arith.constant 7 : index
    %c0_55 = arith.constant 0 : index
    %c0_56 = arith.constant 0 : index
    %97 = vector.load %arg5[%c7, %c0_55, %c0_56] : memref<10x8x32xf32, #tpu.memory_space<vmem>>, vector<1x8x32xf32>
    %98 = vector.shape_cast %97 : vector<1x8x32xf32> to vector<8x32xf32>
    %cst_57 = arith.constant dense<0.000000e+00> : vector<2x32xf32>
    %99 = tpu.matmul %96, %98, %cst_57 {dimension_numbers = #tpu.dot_dimension_numbers<[1], [0], [0], [1], [0, 0, 1, 1], [], []>} : vector<2x8xf32>, vector<8x32xf32>, vector<2x32xf32> -> vector<2x32xf32>
    %100 = arith.addf %94, %99 : vector<2x32xf32>
    %101 = vector.extract_strided_slice %88 {offsets = [0, 4, 0], sizes = [2, 5, 8], strides = [1, 1, 1]} : vector<2x12x8xf32> to vector<2x5x8xf32>
    %cst_58 = arith.constant dense<0xFF800000> : vector<2x8xf32>
    %102 = vector.multi_reduction <maximumf>, %101, %cst_58 [1] : vector<2x5x8xf32> to vector<2x8xf32>
    %c8 = arith.constant 8 : index
    %c0_59 = arith.constant 0 : index
    %c0_60 = arith.constant 0 : index
    %103 = vector.load %arg5[%c8, %c0_59, %c0_60] : memref<10x8x32xf32, #tpu.memory_space<vmem>>, vector<1x8x32xf32>
    %104 = vector.shape_cast %103 : vector<1x8x32xf32> to vector<8x32xf32>
    %cst_61 = arith.constant dense<0.000000e+00> : vector<2x32xf32>
    %105 = tpu.matmul %102, %104, %cst_61 {dimension_numbers = #tpu.dot_dimension_numbers<[1], [0], [0], [1], [0, 0, 1, 1], [], []>} : vector<2x8xf32>, vector<8x32xf32>, vector<2x32xf32> -> vector<2x32xf32>
    %106 = arith.addf %100, %105 : vector<2x32xf32>
    %107 = vector.extract_strided_slice %88 {offsets = [0, 6, 0], sizes = [2, 5, 8], strides = [1, 1, 1]} : vector<2x12x8xf32> to vector<2x5x8xf32>
    %cst_62 = arith.constant dense<0xFF800000> : vector<2x8xf32>
    %108 = vector.multi_reduction <maximumf>, %107, %cst_62 [1] : vector<2x5x8xf32> to vector<2x8xf32>
    %c9 = arith.constant 9 : index
    %c0_63 = arith.constant 0 : index
    %c0_64 = arith.constant 0 : index
    %109 = vector.load %arg5[%c9, %c0_63, %c0_64] : memref<10x8x32xf32, #tpu.memory_space<vmem>>, vector<1x8x32xf32>
    %110 = vector.shape_cast %109 : vector<1x8x32xf32> to vector<8x32xf32>
    %cst_65 = arith.constant dense<0.000000e+00> : vector<2x32xf32>
    %111 = tpu.matmul %108, %110, %cst_65 {dimension_numbers = #tpu.dot_dimension_numbers<[1], [0], [0], [1], [0, 0, 1, 1], [], []>} : vector<2x8xf32>, vector<8x32xf32>, vector<2x32xf32> -> vector<2x32xf32>
    %112 = arith.addf %106, %111 : vector<2x32xf32>
    %c0_66 = arith.constant 0 : index
    %c0_67 = arith.constant 0 : index
    %113 = vector.load %arg7[%c0_66, %c0_67] : memref<1x32xf32, #tpu.memory_space<vmem>>, vector<1x32xf32>
    %114 = vector.broadcast %113 : vector<1x32xf32> to vector<2x32xf32>
    %115 = arith.mulf %112, %114 : vector<2x32xf32>
    %cst_68 = arith.constant dense<0.000000e+00> : vector<2xf32>
    %116 = vector.multi_reduction <add>, %115, %cst_68 [1] : vector<2x32xf32> to vector<2xf32>
    %117 = vector.shape_cast %116 : vector<2xf32> to vector<2x1xf32>
    %c0_69 = arith.constant 0 : index
    %c0_70 = arith.constant 0 : index
    %118 = vector.load %arg8[%c0_69, %c0_70] : memref<1x1xf32, #tpu.memory_space<vmem>>, vector<1x1xf32>
    %119 = vector.broadcast %118 : vector<1x1xf32> to vector<2x1xf32>
    %120 = arith.addf %117, %119 : vector<2x1xf32>
    %cst_71 = arith.constant 0.000000e+00 : f32
    %121 = vector.broadcast %cst_71 : f32 to vector<2x1xf32>
    %122 = arith.subf %121, %120 : vector<2x1xf32>
    %123 = math.exp %122 : vector<2x1xf32>
    %cst_72 = arith.constant 1.000000e+00 : f32
    %124 = vector.broadcast %cst_72 : f32 to vector<2x1xf32>
    %125 = arith.addf %124, %123 : vector<2x1xf32>
    %cst_73 = arith.constant 1.000000e+00 : f32
    %126 = vector.broadcast %cst_73 : f32 to vector<2x1xf32>
    %127 = arith.divf %126, %125 : vector<2x1xf32>
    %c0_74 = arith.constant 0 : index
    %c0_75 = arith.constant 0 : index
    %128 = vector.load %arg9[%c0_74, %c0_75] : memref<2x1xf32, #tpu.memory_space<vmem>>, vector<2x1xf32>
    tpu.vector_store %arg9[%c0_74, %c0_75], %127 {strides = array<i32>} : memref<2x1xf32, #tpu.memory_space<vmem>>, vector<2x1xf32>,
    return
  }
}

</mosaic_0001>

<llo_original>
// kernel: cold_cnn_forward.1
$region0: #{cold_cnn_forward.1}
  #allocation0 [shape = 'u32[]', space=smem, size = 0x4, offset = 0x4, fixed_abs, tag = 'smem constant byte address 0x4 - core index']
  #allocation1 [shape = 'u32[72,128]{1,0:T(1,128)}', space=vmem, size = 0x9000, scoped, tag = 'internal scratch']
  #allocation2 [shape = 'f32[1,1]{1,0:T(1,128)S(1)}', space=vmem, size = 0x200, scoped, tag = 'scoped memory for cold_cnn_forward.1']
  %s0 = inlined_call_operand.vmem [shape: f32[2,16,4], index: 0, kind: input, shape index: {}]
  %s1 = inlined_call_operand.vmem [shape: f32[3,4,8], index: 1, kind: input, shape index: {}]
  %s2 = inlined_call_operand.vmem [shape: f32[5,4,8], index: 2, kind: input, shape index: {}]
  %s3 = inlined_call_operand.vmem [shape: f32[1,1,8], index: 3, kind: input, shape index: {}]
  %s4 = inlined_call_operand.vmem [shape: f32[1,1,8], index: 4, kind: input, shape index: {}]
  %s5 = inlined_call_operand.hbm [shape: f32[10,8,32], index: 5, kind: input, shape index: {}]
  %s6 = inlined_call_operand.vmem [shape: f32[1,32], index: 6, kind: input, shape index: {}]
  %s7 = inlined_call_operand.vmem [shape: f32[1,32], index: 7, kind: input, shape index: {}]
  %s8 = inlined_call_operand.<no memory space> [shape: f32[1,1], index: 8, kind: input, shape index: {}]
  %s9 = inlined_call_operand.vmem [shape: f32[2,1], index: 9, kind: output, shape index: {}]
  %s10 = sld [smem:[#allocation0]]
  $region50: #{cold_cnn_forward.1} parent=0
    _
  %s12 = ssub.s32 1, %s10
  %s13 = scalar_select 0, %s12, %s10
  %v14 = vstv %s8
  %15 = vst [vmem:[#allocation2] sm:$0x1] %v14
  $region1: #{cold_cnn_forward.1} parent=0
    #allocation3 [shape = 'u8[40960]{0}', space=vmem, size = 0xa000, scoped, tag = 'input window, operand 5, single buffered']
    #allocation4 [shape = 's32[1]{0}', space=sflag, size = 0x4, scoped, tag = 'scoped memory for cold_cnn_forward.1']
    %16 = vsyncpa [#allocation4], 0
    // Predicated region
    $region2: #{cold_cnn_forward.1} parent=1 // pred_check
      _
    $region3: #{cold_cnn_forward.1} parent=1 // pred_check_branch
      %18 = sbr.rel (0) target = $region5
    $region4: #{cold_cnn_forward.1} parent=1 // pred_region
      _
    $region5: #{cold_cnn_forward.1} parent=1 // pred_fallthru
      _
    // Predicated region
    $region6: #{cold_cnn_forward.1} parent=1 // pred_check
      _
    $region7: #{cold_cnn_forward.1} parent=1 // pred_check_branch
      %20 = sbr.rel (0) target = $region9
    $region8: #{cold_cnn_forward.1} parent=1 // pred_region
      _
    $region9: #{cold_cnn_forward.1} parent=1 // pred_fallthru
      _
    // Predicated region
    $region10: #{cold_cnn_forward.1} parent=1 // pred_check
      _
    $region11: #{cold_cnn_forward.1} parent=1 // pred_check_branch
      %22 = sbr.rel (0) target = $region13
    $region12: #{cold_cnn_forward.1} parent=1 // pred_region
      _
    $region13: #{cold_cnn_forward.1} parent=1 // pred_fallthru
      _
    // Predicated region
    $region14: #{cold_cnn_forward.1} parent=1 // pred_check
      _
    $region15: #{cold_cnn_forward.1} parent=1 // pred_check_branch
      %24 = sbr.rel (0) target = $region17
    $region16: #{cold_cnn_forward.1} parent=1 // pred_region
      _
    $region17: #{cold_cnn_forward.1} parent=1 // pred_fallthru
      _
    // Predicated region
    $region18: #{cold_cnn_forward.1} parent=1 // pred_check
      _
    $region19: #{cold_cnn_forward.1} parent=1 // pred_check_branch
      %26 = sbr.rel (0) target = $region21
    $region20: #{cold_cnn_forward.1} parent=1 // pred_region
      _
    $region21: #{cold_cnn_forward.1} parent=1 // pred_fallthru
      _
    // Predicated region
    $region22: #{cold_cnn_forward.1} parent=1 // pred_check
      _
    $region23: #{cold_cnn_forward.1} parent=1 // pred_check_branch
      %28 = sbr.rel (0) target = $region25
    $region24: #{cold_cnn_forward.1} parent=1 // pred_region
      %30 = vsyncadd [#allocation4], 0
      %s31 = sshll.u32 %s5, 4
      %s32 = int_to_ptr.hbm [resolvable:$true] %s31
      %s33 = sshll.u32 [#allocation3], 4
      %s34 = int_to_ptr.vmem [resolvable:$true] %s33
      %39 = dma.hbm_to_vmem [thread:$0]  %s32, 1280, %s34, [#allocation4], 128, 128, 8
    $region25: #{cold_cnn_forward.1} parent=1 // pred_fallthru
      _
    // Predicated region
    $region26: #{cold_cnn_forward.1} parent=1 // pred_check
      _
    $region27: #{cold_cnn_forward.1} parent=1 // pred_check_branch
      %41 = sbr.rel (0) target = $region29
    $region28: #{cold_cnn_forward.1} parent=1 // pred_region
      _
    $region29: #{cold_cnn_forward.1} parent=1 // pred_fallthru
      _
    // Predicated region
    $region30: #{cold_cnn_forward.1} parent=1 // pred_check
      _
    $region31: #{cold_cnn_forward.1} parent=1 // pred_check_branch
      %43 = sbr.rel (0) target = $region33
    $region32: #{cold_cnn_forward.1} parent=1 // pred_region
      _
    $region33: #{cold_cnn_forward.1} parent=1 // pred_fallthru
      _
    // Predicated region
    $region34: #{cold_cnn_forward.1} parent=1 // pred_check
      _
    $region35: #{cold_cnn_forward.1} parent=1 // pred_check_branch
      %45 = sbr.rel (0) target = $region37
    $region36: #{cold_cnn_forward.1} parent=1 // pred_region
      _
    $region37: #{cold_cnn_forward.1} parent=1 // pred_fallthru
      _
    // Predicated region
    $region38: #{cold_cnn_forward.1} parent=1 // pred_check
      _
    $region39: #{cold_cnn_forward.1} parent=1 // pred_check_branch
      %47 = sbr.rel (0) target = $region41
    $region40: #{cold_cnn_forward.1} parent=1 // pred_region
      %49 = dma.done [#allocation4], 1280
    $region41: #{cold_cnn_forward.1} parent=1 // pred_fallthru
      _
    %v50 = vld [vmem:[%s0] sm:$0xff]
    %v51 = vld [vmem:[%s0 + $0x8] sm:$0xff]
    %v52 = vld [vmem:[%s0 + $0x10] sm:$0xff]
    %v53 = vld [vmem:[%s0 + $0x18] sm:$0xff]
    %v54 = vld [vmem:[%s6] sm:$0x1]
    %v55 = vld [vmem:[%s1] sm:$0xf]
    %v56 = vld [vmem:[%s1 + $0x4] sm:$0xf]
    %v57 = vld [vmem:[%s1 + $0x8] sm:$0xf]
    %v58 = vld [vmem:[%s3] sm:$0x1]
    %v63 = vrot.slane %v50, 2
    %v64 = vrot.slane %v50, 4
    %v65 = vrot.slane %v50, 6
    %v66 = vrot.slane %v51, 2
    %v67 = vrot.slane %v51, 4
    %v68 = vrot.slane %v52, 2
    %v69 = vrot.slane %v52, 4
    %v70 = vrot.slane %v52, 6
    %v71 = vrot.slane %v53, 2
    %v72 = vrot.slane %v53, 4
    %73 = vst [vmem:[#allocation1] ss:$4 sm:$0xff] %v50
    %s74 = scalar_lea.vmem [#allocation1], 1
    %75 = vst [vmem:[%s74] ss:$4 sm:$0xff] %v63
    %s76 = scalar_lea.vmem [#allocation1], 2
    %77 = vst [vmem:[%s76] ss:$4 sm:$0xff] %v64
    %s78 = scalar_lea.vmem [#allocation1], 3
    %79 = vst [vmem:[%s78] ss:$4 sm:$0xff] %v65
    %s80 = scalar_lea.vmem [#allocation1], 32
    %81 = vst [vmem:[%s80] ss:$4 sm:$0xff] %v51
    %s82 = scalar_lea.vmem [#allocation1], 33
    %83 = vst [vmem:[%s82] ss:$4 sm:$0xff] %v66
    %s84 = scalar_lea.vmem [#allocation1], 34
    %85 = vst [vmem:[%s84] ss:$4 sm:$0xff] %v67
    %s86 = scalar_lea.vmem [#allocation1], 35
    %87 = vst [vmem:[%s86] ss:$4 sm:$0xff] %v52
    %v88 = vld.sshfl [vmem:[#allocation1] sm:$0xff pattern:$0x73625140]
    %v89 = vld.sshfl [vmem:[#allocation1 + $0x20] sm:$0xff pattern:$0x73625140]
    %90 = vst [vmem:[#allocation1] ss:$4 sm:$0xff] %v68
    %91 = vst [vmem:[%s74] ss:$4 sm:$0xff] %v69
    %92 = vst [vmem:[%s76] ss:$4 sm:$0xff] %v70
    %93 = vst [vmem:[%s78] ss:$4 sm:$0xff] %v53
    %94 = vst [vmem:[%s80] ss:$4 sm:$0xff] %v71
    %95 = vst [vmem:[%s82] ss:$4 sm:$0xff] %v72
    %v96 = vld.sshfl [vmem:[#allocation1] sm:$0xff pattern:$0x73625140]
    %v97 = vld.sshfl [vmem:[#allocation1 + $0x20] sm:$0xff pattern:$0x73625140]
    %vm98 = vcmask 31744
    %v99 = vsel %vm98, %v88, 0
    %v101 = vsel %vm98, %v89, 0
    %v103 = vsel %vm98, %v96, 0
    %v105 = vsel %vm98, %v97, 0
    %vm107 = vcmask 1043456
    %v109 = vsel %vm107, %v55, 0
    %111 = vmatpush.msra.mxu0 0.0
    %112 = vmatpush.msra.mxu0 0.0
    %113 = vmatpush.msra.mxu0 0.0
    %114 = vmatpush.msra.mxu0 0.0
    %115 = vmatpush.msra.mxu0 0.0
    %116 = vmatpush.msra.mxu0 0.0
    %117 = vmatpush.msra.mxu0 0.0
    %118 = vmatpush.msra.mxu0 0.0
    %119 = vmatpush.msra.mxu0 0.0
    %120 = vmatpush.msra.mxu0 0.0
    %121 = vmatpush.msra.mxu0 0.0
    %122 = vmatpush.msra.mxu0 0.0
    %123 = vmatpush.msra.mxu0 0.0
    %124 = vmatpush.msra.mxu0 0.0
    %125 = vmatpush.msra.mxu0 0.0
    %126 = vmatpush.msra.mxu0 %v109
    %127 = vmatmul.f32.gmra.mxu0 %v99
    %v128 = vpop.f32.mrf.mxu0
    %v129 = vadd.f32 0.0, %v128
    %130 = vmatmul.f32.gmra.mxu0 %v101
    %v131 = vpop.f32.mrf.mxu0
    %v132 = vadd.f32 0.0, %v131
    %133 = vmatmul.f32.gmra.mxu0 %v103
    %v134 = vpop.f32.mrf.mxu0
    %v135 = vadd.f32 0.0, %v134
    %136 = vmatmul.f32.gmra.mxu0 %v105
    %v137 = vpop.f32.mrf.mxu0
    %v138 = vadd.f32 0.0, %v137
    %139 = vdwg.mxu0
    %v144 = vrot.slane %v129, 2
    %v145 = vrot.slane %v129, 4
    %v146 = vrot.slane %v129, 6
    %v147 = vrot.slane %v132, 2
    %v148 = vrot.slane %v132, 4
    %v149 = vrot.slane %v132, 6
    %v150 = vrot.slane %v135, 2
    %v151 = vrot.slane %v135, 4
    %v152 = vrot.slane %v135, 6
    %v153 = vrot.slane %v138, 2
    %v155 = vperm.slane %v58, 0
    %157 = vst [vmem:[#allocation1] ss:$4 sm:$0xff] %v129
    %s158 = scalar_lea.vmem [#allocation1], 1
    %159 = vst [vmem:[%s158] ss:$4 sm:$0xff] %v144
    %s160 = scalar_lea.vmem [#allocation1], 2
    %161 = vst [vmem:[%s160] ss:$4 sm:$0xff] %v145
    %s162 = scalar_lea.vmem [#allocation1], 3
    %163 = vst [vmem:[%s162] ss:$4 sm:$0xff] %v146
    %s164 = scalar_lea.vmem [#allocation1], 32
    %165 = vst [vmem:[%s164] ss:$4 sm:$0xff] %v132
    %s166 = scalar_lea.vmem [#allocation1], 33
    %167 = vst [vmem:[%s166] ss:$4 sm:$0xff] %v147
    %s168 = scalar_lea.vmem [#allocation1], 34
    %169 = vst [vmem:[%s168] ss:$4 sm:$0xff] %v148
    %v170 = vld.sshfl [vmem:[#allocation1] sm:$0xff pattern:$0x73625140]
    %v171 = vld.sshfl [vmem:[#allocation1 + $0x20] sm:$0xff pattern:$0x73625140]
    %172 = vst [vmem:[#allocation1] ss:$4 sm:$0xff] %v149
    %173 = vst [vmem:[%s158] ss:$4 sm:$0xff] %v135
    %174 = vst [vmem:[%s160] ss:$4 sm:$0xff] %v150
    %175 = vst [vmem:[%s162] ss:$4 sm:$0xff] %v151
    %176 = vst [vmem:[%s164] ss:$4 sm:$0xff] %v152
    %177 = vst [vmem:[%s166] ss:$4 sm:$0xff] %v138
    %178 = vst [vmem:[%s168] ss:$4 sm:$0xff] %v153
    %v179 = vld.sshfl [vmem:[#allocation1] sm:$0xff pattern:$0x73625140]
    %v180 = vld.sshfl [vmem:[#allocation1 + $0x20] sm:$0xff pattern:$0x73625140]
    %v185 = vadd.f32 %v155, %v170
    %v186 = vadd.f32 %v155, %v171
    %v187 = vadd.f32 %v155, %v179
    %v188 = vadd.f32 %v155, %v180
    %v189 = vrot.slane %v51, 6
    %v190 = vrot.slane %v53, 6
    %vm191 = vcmask 1040384
    %vm192 = vcmask 1042434
    %vm193 = vmor %vm191, %vm192
    %vm194 = vcmask 1044484
    %vm195 = vmor %vm193, %vm194
    %vm196 = vcmask 1046534
    %vm197 = vmor %vm195, %vm196
    %v198 = vrot.slane %v50, 7
    %v199 = vrot.slane %v198, 2
    %v200 = vrot.slane %v63, 7
    %v201 = vsel %vm197, %v199, %v200
    %v202 = vrot.slane %v200, 2
    %v203 = vrot.slane %v64, 7
    %v204 = vsel %vm197, %v202, %v203
    %v205 = vrot.slane %v203, 2
    %v206 = vrot.slane %v65, 7
    %v207 = vsel %vm197, %v205, %v206
    %v208 = vrot.slane %v206, 2
    %v209 = vrot.slane %v51, 7
    %v210 = vsel %vm197, %v208, %v209
    %v211 = vrot.slane %v209, 2
    %v212 = vrot.slane %v66, 7
    %v213 = vsel %vm197, %v211, %v212
    %v214 = vrot.slane %v212, 2
    %v215 = vrot.slane %v67, 7
    %v216 = vsel %vm197, %v214, %v215
    %v217 = vrot.slane %v215, 2
    %v218 = vrot.slane %v189, 7
    %v219 = vsel %vm197, %v217, %v218
    %v220 = vrot.slane %v52, 7
    %v221 = vrot.slane %v220, 2
    %v222 = vrot.slane %v68, 7
    %v223 = vsel %vm197, %v221, %v222
    %v224 = vrot.slane %v222, 2
    %v225 = vrot.slane %v69, 7
    %v226 = vsel %vm197, %v224, %v225
    %v227 = vrot.slane %v225, 2
    %v228 = vrot.slane %v70, 7
    %v229 = vsel %vm197, %v227, %v228
    %v230 = vrot.slane %v228, 2
    %v231 = vrot.slane %v53, 7
    %v232 = vsel %vm197, %v230, %v231
    %v233 = vrot.slane %v231, 2
    %v234 = vrot.slane %v71, 7
    %v235 = vsel %vm197, %v233, %v234
    %v236 = vrot.slane %v234, 2
    %v237 = vrot.slane %v72, 7
    %v238 = vsel %vm197, %v236, %v237
    %v239 = vrot.slane %v237, 2
    %v240 = vrot.slane %v190, 7
    %v241 = vsel %vm197, %v239, %v240
    %242 = vst [vmem:[#allocation1] ss:$4 sm:$0xff] %v201
    %s243 = scalar_lea.vmem [#allocation1], 1
    %244 = vst [vmem:[%s243] ss:$4 sm:$0xff] %v204
    %s245 = scalar_lea.vmem [#allocation1], 2
    %246 = vst [vmem:[%s245] ss:$4 sm:$0xff] %v207
    %s247 = scalar_lea.vmem [#allocation1], 3
    %248 = vst [vmem:[%s247] ss:$4 sm:$0xff] %v210
    %s249 = scalar_lea.vmem [#allocation1], 32
    %250 = vst [vmem:[%s249] ss:$4 sm:$0xff] %v213
    %s251 = scalar_lea.vmem [#allocation1], 33
    %252 = vst [vmem:[%s251] ss:$4 sm:$0xff] %v216
    %s253 = scalar_lea.vmem [#allocation1], 34
    %254 = vst [vmem:[%s253] ss:$4 sm:$0xff] %v219
    %s255 = scalar_lea.vmem [#allocation1], 35
    %256 = vst [vmem:[%s255] ss:$4 sm:$0xff] %v223
    %v257 = vld.sshfl [vmem:[#allocation1] sm:$0xff pattern:$0x73625140]
    %v258 = vld.sshfl [vmem:[#allocation1 + $0x20] sm:$0xff pattern:$0x73625140]
    %259 = vst [vmem:[#allocation1] ss:$4 sm:$0xff] %v226
    %260 = vst [vmem:[%s243] ss:$4 sm:$0xff] %v229
    %261 = vst [vmem:[%s245] ss:$4 sm:$0xff] %v232
    %262 = vst [vmem:[%s247] ss:$4 sm:$0xff] %v235
    %263 = vst [vmem:[%s249] ss:$4 sm:$0xff] %v238
    %264 = vst [vmem:[%s251] ss:$4 sm:$0xff] %v241
    %v265 = vld.sshfl [vmem:[#allocation1] sm:$0xff pattern:$0x73625140]
    %v266 = vld.sshfl [vmem:[#allocation1 + $0x20] sm:$0xff pattern:$0x73625140]
    %v267 = vsel %vm98, %v257, 0
    %v269 = vsel %vm98, %v258, 0
    %v271 = vsel %vm98, %v265, 0
    %v273 = vsel %vm98, %v266, 0
    %v276 = vsel %vm107, %v56, 0
    %278 = vmatpush.msra.mxu0 0.0
    %279 = vmatpush.msra.mxu0 0.0
    %280 = vmatpush.msra.mxu0 0.0
    %281 = vmatpush.msra.mxu0 0.0
    %282 = vmatpush.msra.mxu0 0.0
    %283 = vmatpush.msra.mxu0 0.0
    %284 = vmatpush.msra.mxu0 0.0
    %285 = vmatpush.msra.mxu0 0.0
    %286 = vmatpush.msra.mxu0 0.0
    %287 = vmatpush.msra.mxu0 0.0
    %288 = vmatpush.msra.mxu0 0.0
    %289 = vmatpush.msra.mxu0 0.0
    %290 = vmatpush.msra.mxu0 0.0
    %291 = vmatpush.msra.mxu0 0.0
    %292 = vmatpush.msra.mxu0 0.0
    %293 = vmatpush.msra.mxu0 %v276
    %294 = vmatmul.f32.gmra.mxu0 %v267
    %v295 = vpop.f32.mrf.mxu0
    %v296 = vadd.f32 0.0, %v295
    %297 = vmatmul.f32.gmra.mxu0 %v269
    %v298 = vpop.f32.mrf.mxu0
    %v299 = vadd.f32 0.0, %v298
    %300 = vmatmul.f32.gmra.mxu0 %v271
    %v301 = vpop.f32.mrf.mxu0
    %v302 = vadd.f32 0.0, %v301
    %303 = vmatmul.f32.gmra.mxu0 %v273
    %v304 = vpop.f32.mrf.mxu0
    %v305 = vadd.f32 0.0, %v304
    %306 = vdwg.mxu0
    %v311 = vrot.slane %v296, 2
    %v312 = vrot.slane %v296, 4
    %v313 = vrot.slane %v296, 6
    %v314 = vrot.slane %v299, 2
    %v315 = vrot.slane %v299, 4
    %v316 = vrot.slane %v299, 6
    %v317 = vrot.slane %v302, 2
    %v318 = vrot.slane %v302, 4
    %v319 = vrot.slane %v302, 6
    %v320 = vrot.slane %v305, 2
    %321 = vst [vmem:[#allocation1] ss:$4 sm:$0xff] %v296
    %s322 = scalar_lea.vmem [#allocation1], 1
    %323 = vst [vmem:[%s322] ss:$4 sm:$0xff] %v311
    %s324 = scalar_lea.vmem [#allocation1], 2
    %325 = vst [vmem:[%s324] ss:$4 sm:$0xff] %v312
    %s326 = scalar_lea.vmem [#allocation1], 3
    %327 = vst [vmem:[%s326] ss:$4 sm:$0xff] %v313
    %s328 = scalar_lea.vmem [#allocation1], 32
    %329 = vst [vmem:[%s328] ss:$4 sm:$0xff] %v299
    %s330 = scalar_lea.vmem [#allocation1], 33
    %331 = vst [vmem:[%s330] ss:$4 sm:$0xff] %v314
    %s332 = scalar_lea.vmem [#allocation1], 34
    %333 = vst [vmem:[%s332] ss:$4 sm:$0xff] %v315
    %v334 = vld.sshfl [vmem:[#allocation1] sm:$0xff pattern:$0x73625140]
    %v335 = vld.sshfl [vmem:[#allocation1 + $0x20] sm:$0xff pattern:$0x73625140]
    %336 = vst [vmem:[#allocation1] ss:$4 sm:$0xff] %v316
    %337 = vst [vmem:[%s322] ss:$4 sm:$0xff] %v302
    %338 = vst [vmem:[%s324] ss:$4 sm:$0xff] %v317
    %339 = vst [vmem:[%s326] ss:$4 sm:$0xff] %v318
    %340 = vst [vmem:[%s328] ss:$4 sm:$0xff] %v319
    %341 = vst [vmem:[%s330] ss:$4 sm:$0xff] %v305
    %342 = vst [vmem:[%s332] ss:$4 sm:$0xff] %v320
    %v343 = vld.sshfl [vmem:[#allocation1] sm:$0xff pattern:$0x73625140]
    %v344 = vld.sshfl [vmem:[#allocation1 + $0x20] sm:$0xff pattern:$0x73625140]
    %v349 = vadd.f32 %v185, %v334
    %v350 = vadd.f32 %v186, %v335
    %v351 = vadd.f32 %v187, %v343
    %v352 = vadd.f32 %v188, %v344
    %353 = vst.sshfl [vmem:[#allocation1] sm:$0xff pattern:$0x73625140] %v50
    %354 = vst.sshfl [vmem:[#allocation1 + $0x20] sm:$0xff pattern:$0x73625140] %v51
    %s355 = scalar_lea.vmem [#allocation1], 1
    %v356 = vld [vmem:[%s355] ss:$4 sm:$0xff]
    %s357 = scalar_lea.vmem [#allocation1], 2
    %v358 = vld [vmem:[%s357] ss:$4 sm:$0xff]
    %s359 = scalar_lea.vmem [#allocation1], 3
    %v360 = vld [vmem:[%s359] ss:$4 sm:$0xff]
    %s361 = scalar_lea.vmem [#allocation1], 32
    %v362 = vld [vmem:[%s361] ss:$4 sm:$0xff]
    %s363 = scalar_lea.vmem [#allocation1], 33
    %v364 = vld [vmem:[%s363] ss:$4 sm:$0xff]
    %s365 = scalar_lea.vmem [#allocation1], 34
    %v366 = vld [vmem:[%s365] ss:$4 sm:$0xff]
    %s367 = scalar_lea.vmem [#allocation1], 35
    %v368 = vld [vmem:[%s367] ss:$4 sm:$0xff]
    %369 = vst.sshfl [vmem:[#allocation1] sm:$0xff pattern:$0x73625140] %v52
    %370 = vst.sshfl [vmem:[#allocation1 + $0x20] sm:$0xff pattern:$0x73625140] %v53
    %v371 = vld [vmem:[%s355] ss:$4 sm:$0xff]
    %v372 = vld [vmem:[%s357] ss:$4 sm:$0xff]
    %v373 = vld [vmem:[%s359] ss:$4 sm:$0xff]
    %v374 = vld [vmem:[%s361] ss:$4 sm:$0xff]
    %v375 = vld [vmem:[%s363] ss:$4 sm:$0xff]
    %v376 = vld [vmem:[%s365] ss:$4 sm:$0xff]
    %v377 = vld [vmem:[%s367] ss:$4 sm:$0xff]
    %378 = vst [vmem:[#allocation1] ss:$4 sm:$0xff] %v356
    %s379 = scalar_lea.vmem [#allocation1], 1
    %380 = vst [vmem:[%s379] ss:$4 sm:$0xff] %v358
    %s381 = scalar_lea.vmem [#allocation1], 2
    %382 = vst [vmem:[%s381] ss:$4 sm:$0xff] %v360
    %s383 = scalar_lea.vmem [#allocation1], 3
    %384 = vst [vmem:[%s383] ss:$4 sm:$0xff] %v362
    %s385 = scalar_lea.vmem [#allocation1], 32
    %386 = vst [vmem:[%s385] ss:$4 sm:$0xff] %v364
    %s387 = scalar_lea.vmem [#allocation1], 33
    %388 = vst [vmem:[%s387] ss:$4 sm:$0xff] %v366
    %s389 = scalar_lea.vmem [#allocation1], 34
    %390 = vst [vmem:[%s389] ss:$4 sm:$0xff] %v368
    %s391 = scalar_lea.vmem [#allocation1], 35
    %392 = vst [vmem:[%s391] ss:$4 sm:$0xff] %v371
    %v393 = vld.sshfl [vmem:[#allocation1] sm:$0xff pattern:$0x73625140]
    %v394 = vld.sshfl [vmem:[#allocation1 + $0x20] sm:$0xff pattern:$0x73625140]
    %395 = vst [vmem:[#allocation1] ss:$4 sm:$0xff] %v372
    %396 = vst [vmem:[%s379] ss:$4 sm:$0xff] %v373
    %397 = vst [vmem:[%s381] ss:$4 sm:$0xff] %v374
    %398 = vst [vmem:[%s383] ss:$4 sm:$0xff] %v375
    %399 = vst [vmem:[%s385] ss:$4 sm:$0xff] %v376
    %400 = vst [vmem:[%s387] ss:$4 sm:$0xff] %v377
    %v401 = vld.sshfl [vmem:[#allocation1] sm:$0xff pattern:$0x73625140]
    %v402 = vld.sshfl [vmem:[#allocation1 + $0x20] sm:$0xff pattern:$0x73625140]
    %v403 = vsel %vm98, %v393, 0
    %v405 = vsel %vm98, %v394, 0
    %v407 = vsel %vm98, %v401, 0
    %v409 = vsel %vm98, %v402, 0
    %v412 = vsel %vm107, %v57, 0
    %414 = vmatpush.msra.mxu0 0.0
    %415 = vmatpush.msra.mxu0 0.0
    %416 = vmatpush.msra.mxu0 0.0
    %417 = vmatpush.msra.mxu0 0.0
    %418 = vmatpush.msra.mxu0 0.0
    %419 = vmatpush.msra.mxu0 0.0
    %420 = vmatpush.msra.mxu0 0.0
    %421 = vmatpush.msra.mxu0 0.0
    %422 = vmatpush.msra.mxu0 0.0
    %423 = vmatpush.msra.mxu0 0.0
    %424 = vmatpush.msra.mxu0 0.0
    %425 = vmatpush.msra.mxu0 0.0
    %426 = vmatpush.msra.mxu0 0.0
    %427 = vmatpush.msra.mxu0 0.0
    %428 = vmatpush.msra.mxu0 0.0
    %429 = vmatpush.msra.mxu0 %v412
    %430 = vmatmul.f32.gmra.mxu0 %v403
    %v431 = vpop.f32.mrf.mxu0
    %v432 = vadd.f32 0.0, %v431
    %433 = vmatmul.f32.gmra.mxu0 %v405
    %v434 = vpop.f32.mrf.mxu0
    %v435 = vadd.f32 0.0, %v434
    %436 = vmatmul.f32.gmra.mxu0 %v407
    %v437 = vpop.f32.mrf.mxu0
    %v438 = vadd.f32 0.0, %v437
    %439 = vmatmul.f32.gmra.mxu0 %v409
    %v440 = vpop.f32.mrf.mxu0
    %v441 = vadd.f32 0.0, %v440
    %442 = vdwg.mxu0
    %v447 = vrot.slane %v432, 2
    %v448 = vrot.slane %v432, 4
    %v449 = vrot.slane %v432, 6
    %v450 = vrot.slane %v435, 2
    %v451 = vrot.slane %v435, 4
    %v452 = vrot.slane %v435, 6
    %v453 = vrot.slane %v438, 2
    %v454 = vrot.slane %v438, 4
    %v455 = vrot.slane %v438, 6
    %v456 = vrot.slane %v441, 2
    %457 = vst [vmem:[#allocation1] ss:$4 sm:$0xff] %v432
    %s458 = scalar_lea.vmem [#allocation1], 1
    %459 = vst [vmem:[%s458] ss:$4 sm:$0xff] %v447
    %s460 = scalar_lea.vmem [#allocation1], 2
    %461 = vst [vmem:[%s460] ss:$4 sm:$0xff] %v448
    %s462 = scalar_lea.vmem [#allocation1], 3
    %463 = vst [vmem:[%s462] ss:$4 sm:$0xff] %v449
    %s464 = scalar_lea.vmem [#allocation1], 32
    %465 = vst [vmem:[%s464] ss:$4 sm:$0xff] %v435
    %s466 = scalar_lea.vmem [#allocation1], 33
    %467 = vst [vmem:[%s466] ss:$4 sm:$0xff] %v450
    %s468 = scalar_lea.vmem [#allocation1], 34
    %469 = vst [vmem:[%s468] ss:$4 sm:$0xff] %v451
    %v470 = vld.sshfl [vmem:[#allocation1] sm:$0xff pattern:$0x73625140]
    %v471 = vld.sshfl [vmem:[#allocation1 + $0x20] sm:$0xff pattern:$0x73625140]
    %472 = vst [vmem:[#allocation1] ss:$4 sm:$0xff] %v452
    %473 = vst [vmem:[%s458] ss:$4 sm:$0xff] %v438
    %474 = vst [vmem:[%s460] ss:$4 sm:$0xff] %v453
    %475 = vst [vmem:[%s462] ss:$4 sm:$0xff] %v454
    %476 = vst [vmem:[%s464] ss:$4 sm:$0xff] %v455
    %477 = vst [vmem:[%s466] ss:$4 sm:$0xff] %v441
    %478 = vst [vmem:[%s468] ss:$4 sm:$0xff] %v456
    %v479 = vld.sshfl [vmem:[#allocation1] sm:$0xff pattern:$0x73625140]
    %v480 = vld.sshfl [vmem:[#allocation1 + $0x20] sm:$0xff pattern:$0x73625140]
    %v485 = vadd.f32 %v349, %v470
    %v486 = vadd.f32 %v350, %v471
    %v487 = vadd.f32 %v351, %v479
    %v488 = vadd.f32 %v352, %v480
    %v489 = vmax.f32 %v485, 0.0
    %v490 = vmax.f32 %v486, 0.0
    %v491 = vmax.f32 %v487, 0.0
    %v492 = vmax.f32 %v488, 0.0
    %vm493 = vcmask 59392
    %v494 = vsel %vm493, %v489, -inf
    %v495 = vrot.slane %v494, 4
    %v496 = vmax.f32 %v494, %v495
    %v497 = vrot.slane %v496, 2
    %v498 = vmax.f32 %v496, %v497
    %v499 = vrot.slane %v498, 1
    %v500 = vmax.f32 %v498, %v499
    %v501 = vsel %vm493, %v491, -inf
    %v502 = vrot.slane %v501, 4
    %v503 = vmax.f32 %v501, %v502
    %v504 = vrot.slane %v503, 2
    %v505 = vmax.f32 %v503, %v504
    %v506 = vrot.slane %v505, 1
    %v507 = vmax.f32 %v505, %v506
    %v508 = vld [vmem:[#allocation3] sm:$0xff]
    %vm511 = vcmask 1041409
    %v512 = vsel %vm511, %v507, %v500
    %vm513 = vcmask 64512
    %v514 = vsel %vm513, %v512, 0
    %516 = vmatpush.msra.mxu0 0.0
    %517 = vmatpush.msra.mxu0 0.0
    %518 = vmatpush.msra.mxu0 0.0
    %519 = vmatpush.msra.mxu0 0.0
    %520 = vmatpush.msra.mxu0 0.0
    %521 = vmatpush.msra.mxu0 0.0
    %522 = vmatpush.msra.mxu0 0.0
    %523 = vmatpush.msra.mxu0 0.0
    %524 = vmatpush.msra.mxu0 0.0
    %525 = vmatpush.msra.mxu0 0.0
    %526 = vmatpush.msra.mxu0 0.0
    %527 = vmatpush.msra.mxu0 0.0
    %528 = vmatpush.msra.mxu0 0.0
    %529 = vmatpush.msra.mxu0 0.0
    %530 = vmatpush.msra.mxu0 0.0
    %531 = vmatpush.msra.mxu0 %v508
    %532 = vmatmul.f32.gmra.mxu0 %v514
    %v533 = vpop.f32.mrf.mxu0
    %v534 = vadd.f32 0.0, %v533
    %535 = vdwg.mxu0
    %v537 = vperm.slane %v54, 0
    %v539 = vadd.f32 %v537, %v534
    %vm540 = vcmask 61442
    %v541 = vsel %vm540, %v489, -inf
    %v542 = vrot.slane %v541, 4
    %v543 = vmax.f32 %v541, %v542
    %v544 = vrot.slane %v543, 2
    %v545 = vmax.f32 %v543, %v544
    %v546 = vrot.slane %v545, 1
    %v547 = vmax.f32 %v545, %v546
    %v548 = vsel %vm540, %v491, -inf
    %v549 = vrot.slane %v548, 4
    %v550 = vmax.f32 %v548, %v549
    %v551 = vrot.slane %v550, 2
    %v552 = vmax.f32 %v550, %v551
    %v553 = vrot.slane %v552, 1
    %v554 = vmax.f32 %v552, %v553
    %s555 = scalar_lea.vmem [#allocation3], 8
    %v556 = vld [vmem:[%s555] sm:$0xff]
    %v559 = vsel %vm511, %v554, %v547
    %v560 = vsel %vm513, %v559, 0
    %562 = vmatpush.msra.mxu0 0.0
    %563 = vmatpush.msra.mxu0 0.0
    %564 = vmatpush.msra.mxu0 0.0
    %565 = vmatpush.msra.mxu0 0.0
    %566 = vmatpush.msra.mxu0 0.0
    %567 = vmatpush.msra.mxu0 0.0
    %568 = vmatpush.msra.mxu0 0.0
    %569 = vmatpush.msra.mxu0 0.0
    %570 = vmatpush.msra.mxu0 0.0
    %571 = vmatpush.msra.mxu0 0.0
    %572 = vmatpush.msra.mxu0 0.0
    %573 = vmatpush.msra.mxu0 0.0
    %574 = vmatpush.msra.mxu0 0.0
    %575 = vmatpush.msra.mxu0 0.0
    %576 = vmatpush.msra.mxu0 0.0
    %577 = vmatpush.msra.mxu0 %v556
    %578 = vmatmul.f32.gmra.mxu0 %v560
    %v579 = vpop.f32.mrf.mxu0
    %v580 = vadd.f32 0.0, %v579
    %581 = vdwg.mxu0
    %v582 = vadd.f32 %v539, %v580
    %vm583 = vcmask 63492
    %v584 = vsel %vm583, %v489, -inf
    %v585 = vrot.slane %v584, 4
    %v586 = vmax.f32 %v584, %v585
    %v587 = vrot.slane %v586, 2
    %v588 = vmax.f32 %v586, %v587
    %v589 = vrot.slane %v588, 1
    %v590 = vmax.f32 %v588, %v589
    %v591 = vsel %vm583, %v491, -inf
    %v592 = vrot.slane %v591, 4
    %v593 = vmax.f32 %v591, %v592
    %v594 = vrot.slane %v593, 2
    %v595 = vmax.f32 %v593, %v594
    %v596 = vrot.slane %v595, 1
    %v597 = vmax.f32 %v595, %v596
    %s598 = scalar_lea.vmem [#allocation3], 16
    %v599 = vld [vmem:[%s598] sm:$0xff]
    %v602 = vsel %vm511, %v597, %v590
    %v603 = vsel %vm513, %v602, 0
    %605 = vmatpush.msra.mxu0 0.0
    %606 = vmatpush.msra.mxu0 0.0
    %607 = vmatpush.msra.mxu0 0.0
    %608 = vmatpush.msra.mxu0 0.0
    %609 = vmatpush.msra.mxu0 0.0
    %610 = vmatpush.msra.mxu0 0.0
    %611 = vmatpush.msra.mxu0 0.0
    %612 = vmatpush.msra.mxu0 0.0
    %613 = vmatpush.msra.mxu0 0.0
    %614 = vmatpush.msra.mxu0 0.0
    %615 = vmatpush.msra.mxu0 0.0
    %616 = vmatpush.msra.mxu0 0.0
    %617 = vmatpush.msra.mxu0 0.0
    %618 = vmatpush.msra.mxu0 0.0
    %619 = vmatpush.msra.mxu0 0.0
    %620 = vmatpush.msra.mxu0 %v599
    %621 = vmatmul.f32.gmra.mxu0 %v603
    %v622 = vpop.f32.mrf.mxu0
    %v623 = vadd.f32 0.0, %v622
    %624 = vdwg.mxu0
    %v625 = vadd.f32 %v582, %v623
    %vm626 = vcmask 64518
    %v627 = vsel %vm626, %v489, -inf
    %vm628 = vcmask 57344
    %v629 = vsel %vm628, %v490, -inf
    %v630 = vmax.f32 %v627, %v629
    %v631 = vrot.slane %v630, 4
    %v632 = vmax.f32 %v630, %v631
    %v633 = vrot.slane %v632, 2
    %v634 = vmax.f32 %v632, %v633
    %v635 = vrot.slane %v634, 1
    %v636 = vmax.f32 %v634, %v635
    %v637 = vsel %vm626, %v491, -inf
    %v638 = vsel %vm628, %v492, -inf
    %v639 = vmax.f32 %v637, %v638
    %v640 = vrot.slane %v639, 4
    %v641 = vmax.f32 %v639, %v640
    %v642 = vrot.slane %v641, 2
    %v643 = vmax.f32 %v641, %v642
    %v644 = vrot.slane %v643, 1
    %v645 = vmax.f32 %v643, %v644
    %s646 = scalar_lea.vmem [#allocation3], 24
    %v647 = vld [vmem:[%s646] sm:$0xff]
    %v650 = vsel %vm511, %v645, %v636
    %v651 = vsel %vm513, %v650, 0
    %653 = vmatpush.msra.mxu0 0.0
    %654 = vmatpush.msra.mxu0 0.0
    %655 = vmatpush.msra.mxu0 0.0
    %656 = vmatpush.msra.mxu0 0.0
    %657 = vmatpush.msra.mxu0 0.0
    %658 = vmatpush.msra.mxu0 0.0
    %659 = vmatpush.msra.mxu0 0.0
    %660 = vmatpush.msra.mxu0 0.0
    %661 = vmatpush.msra.mxu0 0.0
    %662 = vmatpush.msra.mxu0 0.0
    %663 = vmatpush.msra.mxu0 0.0
    %664 = vmatpush.msra.mxu0 0.0
    %665 = vmatpush.msra.mxu0 0.0
    %666 = vmatpush.msra.mxu0 0.0
    %667 = vmatpush.msra.mxu0 0.0
    %668 = vmatpush.msra.mxu0 %v647
    %669 = vmatmul.f32.gmra.mxu0 %v651
    %v670 = vpop.f32.mrf.mxu0
    %v671 = vadd.f32 0.0, %v670
    %672 = vdwg.mxu0
    %v673 = vadd.f32 %v625, %v671
    %v674 = vsel %vm493, %v490, -inf
    %v675 = vrot.slane %v674, 4
    %v676 = vmax.f32 %v674, %v675
    %v677 = vrot.slane %v676, 2
    %v678 = vmax.f32 %v676, %v677
    %v679 = vrot.slane %v678, 1
    %v680 = vmax.f32 %v678, %v679
    %v681 = vsel %vm493, %v492, -inf
    %v682 = vrot.slane %v681, 4
    %v683 = vmax.f32 %v681, %v682
    %v684 = vrot.slane %v683, 2
    %v685 = vmax.f32 %v683, %v684
    %v686 = vrot.slane %v685, 1
    %v687 = vmax.f32 %v685, %v686
    %s688 = scalar_lea.vmem [#allocation3], 32
    %v689 = vld [vmem:[%s688] sm:$0xff]
    %v692 = vsel %vm511, %v687, %v680
    %v693 = vsel %vm513, %v692, 0
    %695 = vmatpush.msra.mxu0 0.0
    %696 = vmatpush.msra.mxu0 0.0
    %697 = vmatpush.msra.mxu0 0.0
    %698 = vmatpush.msra.mxu0 0.0
    %699 = vmatpush.msra.mxu0 0.0
    %700 = vmatpush.msra.mxu0 0.0
    %701 = vmatpush.msra.mxu0 0.0
    %702 = vmatpush.msra.mxu0 0.0
    %703 = vmatpush.msra.mxu0 0.0
    %704 = vmatpush.msra.mxu0 0.0
    %705 = vmatpush.msra.mxu0 0.0
    %706 = vmatpush.msra.mxu0 0.0
    %707 = vmatpush.msra.mxu0 0.0
    %708 = vmatpush.msra.mxu0 0.0
    %709 = vmatpush.msra.mxu0 0.0
    %710 = vmatpush.msra.mxu0 %v689
    %711 = vmatmul.f32.gmra.mxu0 %v693
    %v712 = vpop.f32.mrf.mxu0
    %v713 = vadd.f32 0.0, %v712
    %714 = vdwg.mxu0
    %v715 = vadd.f32 %v673, %v713
    %v716 = vsel %vm540, %v490, -inf
    %v717 = vrot.slane %v716, 4
    %v718 = vmax.f32 %v716, %v717
    %v719 = vrot.slane %v718, 2
    %v720 = vmax.f32 %v718, %v719
    %v721 = vrot.slane %v720, 1
    %v722 = vmax.f32 %v720, %v721
    %v723 = vsel %vm540, %v492, -inf
    %v724 = vrot.slane %v723, 4
    %v725 = vmax.f32 %v723, %v724
    %v726 = vrot.slane %v725, 2
    %v727 = vmax.f32 %v725, %v726
    %v728 = vrot.slane %v727, 1
    %v729 = vmax.f32 %v727, %v728
    %s730 = scalar_lea.vmem [#allocation3], 40
    %v731 = vld [vmem:[%s730] sm:$0xff]
    %v734 = vsel %vm511, %v729, %v722
    %v735 = vsel %vm513, %v734, 0
    %737 = vmatpush.msra.mxu0 0.0
    %738 = vmatpush.msra.mxu0 0.0
    %739 = vmatpush.msra.mxu0 0.0
    %740 = vmatpush.msra.mxu0 0.0
    %741 = vmatpush.msra.mxu0 0.0
    %742 = vmatpush.msra.mxu0 0.0
    %743 = vmatpush.msra.mxu0 0.0
    %744 = vmatpush.msra.mxu0 0.0
    %745 = vmatpush.msra.mxu0 0.0
    %746 = vmatpush.msra.mxu0 0.0
    %747 = vmatpush.msra.mxu0 0.0
    %748 = vmatpush.msra.mxu0 0.0
    %749 = vmatpush.msra.mxu0 0.0
    %750 = vmatpush.msra.mxu0 0.0
    %751 = vmatpush.msra.mxu0 0.0
    %752 = vmatpush.msra.mxu0 %v731
    %753 = vmatmul.f32.gmra.mxu0 %v735
    %v754 = vpop.f32.mrf.mxu0
    %v755 = vadd.f32 0.0, %v754
    %756 = vdwg.mxu0
    %v757 = vadd.f32 %v715, %v755
    %v758 = vld [vmem:[%s2] sm:$0xf]
    %v759 = vld [vmem:[%s2 + $0x4] sm:$0xf]
    %v760 = vld [vmem:[%s2 + $0x8] sm:$0xf]
    %v761 = vld [vmem:[%s2 + $0xc] sm:$0xf]
    %v762 = vld [vmem:[%s2 + $0x10] sm:$0xf]
    %v763 = vld [vmem:[%s4] sm:$0x1]
    %764 = vst [vmem:[#allocation1] ss:$2 sm:$0xff] %v50
    %s765 = scalar_lea.vmem [#allocation1], 1
    %766 = vst [vmem:[%s765] ss:$2 sm:$0xff] %v64
    %s767 = scalar_lea.vmem [#allocation1], 16
    %768 = vst [vmem:[%s767] ss:$2 sm:$0xff] %v51
    %s769 = scalar_lea.vmem [#allocation1], 17
    %770 = vst [vmem:[%s769] ss:$2 sm:$0xff] %v52
    %s771 = scalar_lea.vmem [#allocation1], 32
    %772 = vst [vmem:[%s771] ss:$2 sm:$0xff] %v69
    %s773 = scalar_lea.vmem [#allocation1], 33
    %774 = vst [vmem:[%s773] ss:$2 sm:$0xff] %v53
    %v775 = vld.sshfl [vmem:[#allocation1] sm:$0xff pattern:$0x75316420]
    %v776 = vld.sshfl [vmem:[#allocation1 + $0x10] sm:$0xff pattern:$0x75316420]
    %v777 = vld.sshfl [vmem:[#allocation1 + $0x20] sm:$0xff pattern:$0x75316420]
    %v778 = vsel %vm98, %v775, 0
    %v780 = vsel %vm98, %v776, 0
    %v782 = vsel %vm98, %v777, 0
    %v785 = vsel %vm107, %v758, 0
    %787 = vmatpush.msra.mxu0 0.0
    %788 = vmatpush.msra.mxu0 0.0
    %789 = vmatpush.msra.mxu0 0.0
    %790 = vmatpush.msra.mxu0 0.0
    %791 = vmatpush.msra.mxu0 0.0
    %792 = vmatpush.msra.mxu0 0.0
    %793 = vmatpush.msra.mxu0 0.0
    %794 = vmatpush.msra.mxu0 0.0
    %795 = vmatpush.msra.mxu0 0.0
    %796 = vmatpush.msra.mxu0 0.0
    %797 = vmatpush.msra.mxu0 0.0
    %798 = vmatpush.msra.mxu0 0.0
    %799 = vmatpush.msra.mxu0 0.0
    %800 = vmatpush.msra.mxu0 0.0
    %801 = vmatpush.msra.mxu0 0.0
    %802 = vmatpush.msra.mxu0 %v785
    %803 = vmatmul.f32.gmra.mxu0 %v778
    %v804 = vpop.f32.mrf.mxu0
    %v805 = vadd.f32 0.0, %v804
    %806 = vmatmul.f32.gmra.mxu0 %v780
    %v807 = vpop.f32.mrf.mxu0
    %v808 = vadd.f32 0.0, %v807
    %809 = vmatmul.f32.gmra.mxu0 %v782
    %v810 = vpop.f32.mrf.mxu0
    %v811 = vadd.f32 0.0, %v810
    %812 = vdwg.mxu0
    %v816 = vrot.slane %v805, 4
    %v817 = vrot.slane %v808, 4
    %v818 = vrot.slane %v811, 4
    %v820 = vperm.slane %v763, 0
    %822 = vst [vmem:[#allocation1] ss:$2 sm:$0xff] %v805
    %s823 = scalar_lea.vmem [#allocation1], 1
    %824 = vst [vmem:[%s823] ss:$2 sm:$0xff] %v816
    %s825 = scalar_lea.vmem [#allocation1], 16
    %826 = vst [vmem:[%s825] ss:$2 sm:$0xff] %v808
    %v827 = vld.sshfl [vmem:[#allocation1] sm:$0xff pattern:$0x75316420]
    %v828 = vld.sshfl [vmem:[#allocation1 + $0x10] sm:$0xff pattern:$0x75316420]
    %s829 = scalar_lea.vmem [#allocation1], 32
    %830 = vst [vmem:[%s829] ss:$2 sm:$0xff] %v817
    %s831 = scalar_lea.vmem [#allocation1], 33
    %832 = vst [vmem:[%s831] ss:$2 sm:$0xff] %v811
    %s833 = scalar_lea.vmem [#allocation1], 48
    %834 = vst [vmem:[%s833] ss:$2 sm:$0xff] %v818
    %v835 = vld.sshfl [vmem:[#allocation1 + $0x20] sm:$0xff pattern:$0x75316420]
    %v836 = vld.sshfl [vmem:[#allocation1 + $0x30] sm:$0xff pattern:$0x75316420]
    %v841 = vadd.f32 %v820, %v827
    %v842 = vadd.f32 %v820, %v828
    %v843 = vadd.f32 %v820, %v835
    %v844 = vadd.f32 %v820, %v836
    %vm845 = vcmask 1042432
    %vm846 = vcmask 1046532
    %vm847 = vmor %vm845, %vm846
    %v848 = vrot.slane %v50, 5
    %v849 = vrot.slane %v848, 4
    %v850 = vrot.slane %v64, 5
    %v851 = vsel %vm847, %v849, %v850
    %v852 = vrot.slane %v850, 4
    %v853 = vrot.slane %v51, 5
    %v854 = vsel %vm847, %v852, %v853
    %v855 = vrot.slane %v853, 4
    %v856 = vrot.slane %v67, 5
    %v857 = vsel %vm847, %v855, %v856
    %v858 = vrot.slane %v52, 5
    %v859 = vrot.slane %v858, 4
    %v860 = vrot.slane %v69, 5
    %v861 = vsel %vm847, %v859, %v860
    %v862 = vrot.slane %v860, 4
    %v863 = vrot.slane %v53, 5
    %v864 = vsel %vm847, %v862, %v863
    %v865 = vrot.slane %v863, 4
    %v866 = vrot.slane %v72, 5
    %v867 = vsel %vm847, %v865, %v866
    %868 = vst [vmem:[#allocation1] ss:$2 sm:$0xff] %v851
    %s869 = scalar_lea.vmem [#allocation1], 1
    %870 = vst [vmem:[%s869] ss:$2 sm:$0xff] %v854
    %s871 = scalar_lea.vmem [#allocation1], 16
    %872 = vst [vmem:[%s871] ss:$2 sm:$0xff] %v857
    %s873 = scalar_lea.vmem [#allocation1], 17
    %874 = vst [vmem:[%s873] ss:$2 sm:$0xff] %v861
    %s875 = scalar_lea.vmem [#allocation1], 32
    %876 = vst [vmem:[%s875] ss:$2 sm:$0xff] %v864
    %s877 = scalar_lea.vmem [#allocation1], 33
    %878 = vst [vmem:[%s877] ss:$2 sm:$0xff] %v867
    %v879 = vld.sshfl [vmem:[#allocation1] sm:$0xff pattern:$0x75316420]
    %v880 = vld.sshfl [vmem:[#allocation1 + $0x10] sm:$0xff pattern:$0x75316420]
    %v881 = vld.sshfl [vmem:[#allocation1 + $0x20] sm:$0xff pattern:$0x75316420]
    %v882 = vsel %vm98, %v879, 0
    %v884 = vsel %vm98, %v880, 0
    %v886 = vsel %vm98, %v881, 0
    %v889 = vsel %vm107, %v759, 0
    %891 = vmatpush.msra.mxu0 0.0
    %892 = vmatpush.msra.mxu0 0.0
    %893 = vmatpush.msra.mxu0 0.0
    %894 = vmatpush.msra.mxu0 0.0
    %895 = vmatpush.msra.mxu0 0.0
    %896 = vmatpush.msra.mxu0 0.0
    %897 = vmatpush.msra.mxu0 0.0
    %898 = vmatpush.msra.mxu0 0.0
    %899 = vmatpush.msra.mxu0 0.0
    %900 = vmatpush.msra.mxu0 0.0
    %901 = vmatpush.msra.mxu0 0.0
    %902 = vmatpush.msra.mxu0 0.0
    %903 = vmatpush.msra.mxu0 0.0
    %904 = vmatpush.msra.mxu0 0.0
    %905 = vmatpush.msra.mxu0 0.0
    %906 = vmatpush.msra.mxu0 %v889
    %907 = vmatmul.f32.gmra.mxu0 %v882
    %v908 = vpop.f32.mrf.mxu0
    %v909 = vadd.f32 0.0, %v908
    %910 = vmatmul.f32.gmra.mxu0 %v884
    %v911 = vpop.f32.mrf.mxu0
    %v912 = vadd.f32 0.0, %v911
    %913 = vmatmul.f32.gmra.mxu0 %v886
    %v914 = vpop.f32.mrf.mxu0
    %v915 = vadd.f32 0.0, %v914
    %916 = vdwg.mxu0
    %v920 = vrot.slane %v909, 4
    %v921 = vrot.slane %v912, 4
    %v922 = vrot.slane %v915, 4
    %923 = vst [vmem:[#allocation1] ss:$2 sm:$0xff] %v909
    %s924 = scalar_lea.vmem [#allocation1], 1
    %925 = vst [vmem:[%s924] ss:$2 sm:$0xff] %v920
    %s926 = scalar_lea.vmem [#allocation1], 16
    %927 = vst [vmem:[%s926] ss:$2 sm:$0xff] %v912
    %v928 = vld.sshfl [vmem:[#allocation1] sm:$0xff pattern:$0x75316420]
    %v929 = vld.sshfl [vmem:[#allocation1 + $0x10] sm:$0xff pattern:$0x75316420]
    %s930 = scalar_lea.vmem [#allocation1], 32
    %931 = vst [vmem:[%s930] ss:$2 sm:$0xff] %v921
    %s932 = scalar_lea.vmem [#allocation1], 33
    %933 = vst [vmem:[%s932] ss:$2 sm:$0xff] %v915
    %s934 = scalar_lea.vmem [#allocation1], 48
    %935 = vst [vmem:[%s934] ss:$2 sm:$0xff] %v922
    %v936 = vld.sshfl [vmem:[#allocation1 + $0x20] sm:$0xff pattern:$0x75316420]
    %v937 = vld.sshfl [vmem:[#allocation1 + $0x30] sm:$0xff pattern:$0x75316420]
    %v942 = vadd.f32 %v841, %v928
    %v943 = vadd.f32 %v842, %v929
    %v944 = vadd.f32 %v843, %v936
    %v945 = vadd.f32 %v844, %v937
    %vm946 = vcmask 1041408
    %vm947 = vcmask 1045508
    %vm948 = vmor %vm946, %vm947
    %v949 = vrot.slane %v65, 4
    %v950 = vrot.slane %v64, 6
    %v951 = vsel %vm948, %v949, %v950
    %v952 = vrot.slane %v950, 4
    %v953 = vsel %vm948, %v952, %v189
    %v954 = vrot.slane %v189, 4
    %v955 = vrot.slane %v67, 6
    %v956 = vsel %vm948, %v954, %v955
    %v957 = vrot.slane %v70, 4
    %v958 = vrot.slane %v69, 6
    %v959 = vsel %vm948, %v957, %v958
    %v960 = vrot.slane %v958, 4
    %v961 = vsel %vm948, %v960, %v190
    %v962 = vrot.slane %v190, 4
    %v963 = vrot.slane %v72, 6
    %v964 = vsel %vm948, %v962, %v963
    %965 = vst [vmem:[#allocation1] ss:$2 sm:$0xff] %v951
    %s966 = scalar_lea.vmem [#allocation1], 1
    %967 = vst [vmem:[%s966] ss:$2 sm:$0xff] %v953
    %s968 = scalar_lea.vmem [#allocation1], 16
    %969 = vst [vmem:[%s968] ss:$2 sm:$0xff] %v956
    %s970 = scalar_lea.vmem [#allocation1], 17
    %971 = vst [vmem:[%s970] ss:$2 sm:$0xff] %v959
    %s972 = scalar_lea.vmem [#allocation1], 32
    %973 = vst [vmem:[%s972] ss:$2 sm:$0xff] %v961
    %s974 = scalar_lea.vmem [#allocation1], 33
    %975 = vst [vmem:[%s974] ss:$2 sm:$0xff] %v964
    %v976 = vld.sshfl [vmem:[#allocation1] sm:$0xff pattern:$0x75316420]
    %v977 = vld.sshfl [vmem:[#allocation1 + $0x10] sm:$0xff pattern:$0x75316420]
    %v978 = vld.sshfl [vmem:[#allocation1 + $0x20] sm:$0xff pattern:$0x75316420]
    %v979 = vsel %vm98, %v976, 0
    %v981 = vsel %vm98, %v977, 0
    %v983 = vsel %vm98, %v978, 0
    %v986 = vsel %vm107, %v760, 0
    %988 = vmatpush.msra.mxu0 0.0
    %989 = vmatpush.msra.mxu0 0.0
    %990 = vmatpush.msra.mxu0 0.0
    %991 = vmatpush.msra.mxu0 0.0
    %992 = vmatpush.msra.mxu0 0.0
    %993 = vmatpush.msra.mxu0 0.0
    %994 = vmatpush.msra.mxu0 0.0
    %995 = vmatpush.msra.mxu0 0.0
    %996 = vmatpush.msra.mxu0 0.0
    %997 = vmatpush.msra.mxu0 0.0
    %998 = vmatpush.msra.mxu0 0.0
    %999 = vmatpush.msra.mxu0 0.0
    %1000 = vmatpush.msra.mxu0 0.0
    %1001 = vmatpush.msra.mxu0 0.0
    %1002 = vmatpush.msra.mxu0 0.0
    %1003 = vmatpush.msra.mxu0 %v986
    %1004 = vmatmul.f32.gmra.mxu0 %v979
    %v1005 = vpop.f32.mrf.mxu0
    %v1006 = vadd.f32 0.0, %v1005
    %1007 = vmatmul.f32.gmra.mxu0 %v981
    %v1008 = vpop.f32.mrf.mxu0
    %v1009 = vadd.f32 0.0, %v1008
    %1010 = vmatmul.f32.gmra.mxu0 %v983
    %v1011 = vpop.f32.mrf.mxu0
    %v1012 = vadd.f32 0.0, %v1011
    %1013 = vdwg.mxu0
    %v1017 = vrot.slane %v1006, 4
    %v1018 = vrot.slane %v1009, 4
    %v1019 = vrot.slane %v1012, 4
    %1020 = vst [vmem:[#allocation1] ss:$2 sm:$0xff] %v1006
    %s1021 = scalar_lea.vmem [#allocation1], 1
    %1022 = vst [vmem:[%s1021] ss:$2 sm:$0xff] %v1017
    %s1023 = scalar_lea.vmem [#allocation1], 16
    %1024 = vst [vmem:[%s1023] ss:$2 sm:$0xff] %v1009
    %v1025 = vld.sshfl [vmem:[#allocation1] sm:$0xff pattern:$0x75316420]
    %v1026 = vld.sshfl [vmem:[#allocation1 + $0x10] sm:$0xff pattern:$0x75316420]
    %s1027 = scalar_lea.vmem [#allocation1], 32
    %1028 = vst [vmem:[%s1027] ss:$2 sm:$0xff] %v1018
    %s1029 = scalar_lea.vmem [#allocation1], 33
    %1030 = vst [vmem:[%s1029] ss:$2 sm:$0xff] %v1012
    %s1031 = scalar_lea.vmem [#allocation1], 48
    %1032 = vst [vmem:[%s1031] ss:$2 sm:$0xff] %v1019
    %v1033 = vld.sshfl [vmem:[#allocation1 + $0x20] sm:$0xff pattern:$0x75316420]
    %v1034 = vld.sshfl [vmem:[#allocation1 + $0x30] sm:$0xff pattern:$0x75316420]
    %v1039 = vadd.f32 %v942, %v1025
    %v1040 = vadd.f32 %v943, %v1026
    %v1041 = vadd.f32 %v944, %v1033
    %v1042 = vadd.f32 %v945, %v1034
    %vm1043 = vmor %vm191, %vm194
    %v1044 = vrot.slane %v198, 4
    %v1045 = vsel %vm1043, %v1044, %v203
    %v1046 = vrot.slane %v203, 4
    %v1047 = vsel %vm1043, %v1046, %v209
    %v1048 = vrot.slane %v209, 4
    %v1049 = vsel %vm1043, %v1048, %v215
    %v1050 = vrot.slane %v220, 4
    %v1051 = vsel %vm1043, %v1050, %v225
    %v1052 = vrot.slane %v225, 4
    %v1053 = vsel %vm1043, %v1052, %v231
    %v1054 = vrot.slane %v231, 4
    %v1055 = vsel %vm1043, %v1054, %v237
    %1056 = vst [vmem:[#allocation1] ss:$2 sm:$0xff] %v1045
    %s1057 = scalar_lea.vmem [#allocation1], 1
    %1058 = vst [vmem:[%s1057] ss:$2 sm:$0xff] %v1047
    %s1059 = scalar_lea.vmem [#allocation1], 16
    %1060 = vst [vmem:[%s1059] ss:$2 sm:$0xff] %v1049
    %s1061 = scalar_lea.vmem [#allocation1], 17
    %1062 = vst [vmem:[%s1061] ss:$2 sm:$0xff] %v1051
    %s1063 = scalar_lea.vmem [#allocation1], 32
    %1064 = vst [vmem:[%s1063] ss:$2 sm:$0xff] %v1053
    %s1065 = scalar_lea.vmem [#allocation1], 33
    %1066 = vst [vmem:[%s1065] ss:$2 sm:$0xff] %v1055
    %v1067 = vld.sshfl [vmem:[#allocation1] sm:$0xff pattern:$0x75316420]
    %v1068 = vld.sshfl [vmem:[#allocation1 + $0x10] sm:$0xff pattern:$0x75316420]
    %v1069 = vld.sshfl [vmem:[#allocation1 + $0x20] sm:$0xff pattern:$0x75316420]
    %v1070 = vsel %vm98, %v1067, 0
    %v1072 = vsel %vm98, %v1068, 0
    %v1074 = vsel %vm98, %v1069, 0
    %v1077 = vsel %vm107, %v761, 0
    %1079 = vmatpush.msra.mxu0 0.0
    %1080 = vmatpush.msra.mxu0 0.0
    %1081 = vmatpush.msra.mxu0 0.0
    %1082 = vmatpush.msra.mxu0 0.0
    %1083 = vmatpush.msra.mxu0 0.0
    %1084 = vmatpush.msra.mxu0 0.0
    %1085 = vmatpush.msra.mxu0 0.0
    %1086 = vmatpush.msra.mxu0 0.0
    %1087 = vmatpush.msra.mxu0 0.0
    %1088 = vmatpush.msra.mxu0 0.0
    %1089 = vmatpush.msra.mxu0 0.0
    %1090 = vmatpush.msra.mxu0 0.0
    %1091 = vmatpush.msra.mxu0 0.0
    %1092 = vmatpush.msra.mxu0 0.0
    %1093 = vmatpush.msra.mxu0 0.0
    %1094 = vmatpush.msra.mxu0 %v1077
    %1095 = vmatmul.f32.gmra.mxu0 %v1070
    %v1096 = vpop.f32.mrf.mxu0
    %v1097 = vadd.f32 0.0, %v1096
    %1098 = vmatmul.f32.gmra.mxu0 %v1072
    %v1099 = vpop.f32.mrf.mxu0
    %v1100 = vadd.f32 0.0, %v1099
    %1101 = vmatmul.f32.gmra.mxu0 %v1074
    %v1102 = vpop.f32.mrf.mxu0
    %v1103 = vadd.f32 0.0, %v1102
    %1104 = vdwg.mxu0
    %v1108 = vrot.slane %v1097, 4
    %v1109 = vrot.slane %v1100, 4
    %v1110 = vrot.slane %v1103, 4
    %1111 = vst [vmem:[#allocation1] ss:$2 sm:$0xff] %v1097
    %s1112 = scalar_lea.vmem [#allocation1], 1
    %1113 = vst [vmem:[%s1112] ss:$2 sm:$0xff] %v1108
    %s1114 = scalar_lea.vmem [#allocation1], 16
    %1115 = vst [vmem:[%s1114] ss:$2 sm:$0xff] %v1100
    %v1116 = vld.sshfl [vmem:[#allocation1] sm:$0xff pattern:$0x75316420]
    %v1117 = vld.sshfl [vmem:[#allocation1 + $0x10] sm:$0xff pattern:$0x75316420]
    %s1118 = scalar_lea.vmem [#allocation1], 32
    %1119 = vst [vmem:[%s1118] ss:$2 sm:$0xff] %v1109
    %s1120 = scalar_lea.vmem [#allocation1], 33
    %1121 = vst [vmem:[%s1120] ss:$2 sm:$0xff] %v1103
    %s1122 = scalar_lea.vmem [#allocation1], 48
    %1123 = vst [vmem:[%s1122] ss:$2 sm:$0xff] %v1110
    %v1124 = vld.sshfl [vmem:[#allocation1 + $0x20] sm:$0xff pattern:$0x75316420]
    %v1125 = vld.sshfl [vmem:[#allocation1 + $0x30] sm:$0xff pattern:$0x75316420]
    %v1130 = vadd.f32 %v1039, %v1116
    %v1131 = vadd.f32 %v1040, %v1117
    %v1132 = vadd.f32 %v1041, %v1124
    %v1133 = vadd.f32 %v1042, %v1125
    %1134 = vst.sshfl [vmem:[#allocation1] sm:$0xff pattern:$0x75316420] %v50
    %1135 = vst.sshfl [vmem:[#allocation1 + $0x10] sm:$0xff pattern:$0x75316420] %v51
    %s1136 = scalar_lea.vmem [#allocation1], 1
    %v1137 = vld [vmem:[%s1136] ss:$2 sm:$0xff]
    %s1138 = scalar_lea.vmem [#allocation1], 16
    %v1139 = vld [vmem:[%s1138] ss:$2 sm:$0xff]
    %s1140 = scalar_lea.vmem [#allocation1], 17
    %v1141 = vld [vmem:[%s1140] ss:$2 sm:$0xff]
    %1142 = vst.sshfl [vmem:[#allocation1 + $0x20] sm:$0xff pattern:$0x75316420] %v52
    %1143 = vst.sshfl [vmem:[#allocation1 + $0x30] sm:$0xff pattern:$0x75316420] %v53
    %s1144 = scalar_lea.vmem [#allocation1], 33
    %v1145 = vld [vmem:[%s1144] ss:$2 sm:$0xff]
    %s1146 = scalar_lea.vmem [#allocation1], 48
    %v1147 = vld [vmem:[%s1146] ss:$2 sm:$0xff]
    %s1148 = scalar_lea.vmem [#allocation1], 49
    %v1149 = vld [vmem:[%s1148] ss:$2 sm:$0xff]
    %1150 = vst [vmem:[#allocation1] ss:$2 sm:$0xff] %v1137
    %s1151 = scalar_lea.vmem [#allocation1], 1
    %1152 = vst [vmem:[%s1151] ss:$2 sm:$0xff] %v1139
    %s1153 = scalar_lea.vmem [#allocation1], 16
    %1154 = vst [vmem:[%s1153] ss:$2 sm:$0xff] %v1141
    %s1155 = scalar_lea.vmem [#allocation1], 17
    %1156 = vst [vmem:[%s1155] ss:$2 sm:$0xff] %v1145
    %s1157 = scalar_lea.vmem [#allocation1], 32
    %1158 = vst [vmem:[%s1157] ss:$2 sm:$0xff] %v1147
    %s1159 = scalar_lea.vmem [#allocation1], 33
    %1160 = vst [vmem:[%s1159] ss:$2 sm:$0xff] %v1149
    %v1161 = vld.sshfl [vmem:[#allocation1] sm:$0xff pattern:$0x75316420]
    %v1162 = vld.sshfl [vmem:[#allocation1 + $0x10] sm:$0xff pattern:$0x75316420]
    %v1163 = vld.sshfl [vmem:[#allocation1 + $0x20] sm:$0xff pattern:$0x75316420]
    %v1164 = vsel %vm98, %v1161, 0
    %v1166 = vsel %vm98, %v1162, 0
    %v1168 = vsel %vm98, %v1163, 0
    %v1171 = vsel %vm107, %v762, 0
    %1173 = vmatpush.msra.mxu0 0.0
    %1174 = vmatpush.msra.mxu0 0.0
    %1175 = vmatpush.msra.mxu0 0.0
    %1176 = vmatpush.msra.mxu0 0.0
    %1177 = vmatpush.msra.mxu0 0.0
    %1178 = vmatpush.msra.mxu0 0.0
    %1179 = vmatpush.msra.mxu0 0.0
    %1180 = vmatpush.msra.mxu0 0.0
    %1181 = vmatpush.msra.mxu0 0.0
    %1182 = vmatpush.msra.mxu0 0.0
    %1183 = vmatpush.msra.mxu0 0.0
    %1184 = vmatpush.msra.mxu0 0.0
    %1185 = vmatpush.msra.mxu0 0.0
    %1186 = vmatpush.msra.mxu0 0.0
    %1187 = vmatpush.msra.mxu0 0.0
    %1188 = vmatpush.msra.mxu0 %v1171
    %1189 = vmatmul.f32.gmra.mxu0 %v1164
    %v1190 = vpop.f32.mrf.mxu0
    %v1191 = vadd.f32 0.0, %v1190
    %1192 = vmatmul.f32.gmra.mxu0 %v1166
    %v1193 = vpop.f32.mrf.mxu0
    %v1194 = vadd.f32 0.0, %v1193
    %1195 = vmatmul.f32.gmra.mxu0 %v1168
    %v1196 = vpop.f32.mrf.mxu0
    %v1197 = vadd.f32 0.0, %v1196
    %1198 = vdwg.mxu0
    %v1202 = vrot.slane %v1191, 4
    %v1203 = vrot.slane %v1194, 4
    %v1204 = vrot.slane %v1197, 4
    %1205 = vst [vmem:[#allocation1] ss:$2 sm:$0xff] %v1191
    %s1206 = scalar_lea.vmem [#allocation1], 1
    %1207 = vst [vmem:[%s1206] ss:$2 sm:$0xff] %v1202
    %s1208 = scalar_lea.vmem [#allocation1], 16
    %1209 = vst [vmem:[%s1208] ss:$2 sm:$0xff] %v1194
    %v1210 = vld.sshfl [vmem:[#allocation1] sm:$0xff pattern:$0x75316420]
    %v1211 = vld.sshfl [vmem:[#allocation1 + $0x10] sm:$0xff pattern:$0x75316420]
    %s1212 = scalar_lea.vmem [#allocation1], 32
    %1213 = vst [vmem:[%s1212] ss:$2 sm:$0xff] %v1203
    %s1214 = scalar_lea.vmem [#allocation1], 33
    %1215 = vst [vmem:[%s1214] ss:$2 sm:$0xff] %v1197
    %s1216 = scalar_lea.vmem [#allocation1], 48
    %1217 = vst [vmem:[%s1216] ss:$2 sm:$0xff] %v1204
    %v1218 = vld.sshfl [vmem:[#allocation1 + $0x20] sm:$0xff pattern:$0x75316420]
    %v1219 = vld.sshfl [vmem:[#allocation1 + $0x30] sm:$0xff pattern:$0x75316420]
    %v1224 = vadd.f32 %v1130, %v1210
    %v1225 = vadd.f32 %v1131, %v1211
    %v1226 = vadd.f32 %v1132, %v1218
    %v1227 = vadd.f32 %v1133, %v1219
    %v1228 = vmax.f32 %v1224, 0.0
    %v1229 = vmax.f32 %v1225, 0.0
    %v1230 = vmax.f32 %v1226, 0.0
    %v1231 = vmax.f32 %v1227, 0.0
    %vm1232 = vcmask 61440
    %v1233 = vsel %vm1232, %v1228, -inf
    %v1234 = vrot.slane %v1233, 4
    %v1235 = vmax.f32 %v1233, %v1234
    %v1236 = vrot.slane %v1235, 2
    %v1237 = vmax.f32 %v1235, %v1236
    %v1238 = vrot.slane %v1237, 1
    %v1239 = vmax.f32 %v1237, %v1238
    %v1240 = vsel %vm1232, %v1230, -inf
    %v1241 = vrot.slane %v1240, 4
    %v1242 = vmax.f32 %v1240, %v1241
    %v1243 = vrot.slane %v1242, 2
    %v1244 = vmax.f32 %v1242, %v1243
    %v1245 = vrot.slane %v1244, 1
    %v1246 = vmax.f32 %v1244, %v1245
    %s1247 = scalar_lea.vmem [#allocation3], 48
    %v1248 = vld [vmem:[%s1247] sm:$0xff]
    %v1251 = vsel %vm511, %v1246, %v1239
    %v1252 = vsel %vm513, %v1251, 0
    %1254 = vmatpush.msra.mxu0 0.0
    %1255 = vmatpush.msra.mxu0 0.0
    %1256 = vmatpush.msra.mxu0 0.0
    %1257 = vmatpush.msra.mxu0 0.0
    %1258 = vmatpush.msra.mxu0 0.0
    %1259 = vmatpush.msra.mxu0 0.0
    %1260 = vmatpush.msra.mxu0 0.0
    %1261 = vmatpush.msra.mxu0 0.0
    %1262 = vmatpush.msra.mxu0 0.0
    %1263 = vmatpush.msra.mxu0 0.0
    %1264 = vmatpush.msra.mxu0 0.0
    %1265 = vmatpush.msra.mxu0 0.0
    %1266 = vmatpush.msra.mxu0 0.0
    %1267 = vmatpush.msra.mxu0 0.0
    %1268 = vmatpush.msra.mxu0 0.0
    %1269 = vmatpush.msra.mxu0 %v1248
    %1270 = vmatmul.f32.gmra.mxu0 %v1252
    %v1271 = vpop.f32.mrf.mxu0
    %v1272 = vadd.f32 0.0, %v1271
    %1273 = vdwg.mxu0
    %v1274 = vadd.f32 %v757, %v1272
    %vm1275 = vcmask 63490
    %v1276 = vsel %vm1275, %v1228, -inf
    %v1277 = vrot.slane %v1276, 4
    %v1278 = vmax.f32 %v1276, %v1277
    %v1279 = vrot.slane %v1278, 2
    %v1280 = vmax.f32 %v1278, %v1279
    %v1281 = vrot.slane %v1280, 1
    %v1282 = vmax.f32 %v1280, %v1281
    %v1283 = vsel %vm1275, %v1230, -inf
    %v1284 = vrot.slane %v1283, 4
    %v1285 = vmax.f32 %v1283, %v1284
    %v1286 = vrot.slane %v1285, 2
    %v1287 = vmax.f32 %v1285, %v1286
    %v1288 = vrot.slane %v1287, 1
    %v1289 = vmax.f32 %v1287, %v1288
    %s1290 = scalar_lea.vmem [#allocation3], 56
    %v1291 = vld [vmem:[%s1290] sm:$0xff]
    %v1294 = vsel %vm511, %v1289, %v1282
    %v1295 = vsel %vm513, %v1294, 0
    %1297 = vmatpush.msra.mxu0 0.0
    %1298 = vmatpush.msra.mxu0 0.0
    %1299 = vmatpush.msra.mxu0 0.0
    %1300 = vmatpush.msra.mxu0 0.0
    %1301 = vmatpush.msra.mxu0 0.0
    %1302 = vmatpush.msra.mxu0 0.0
    %1303 = vmatpush.msra.mxu0 0.0
    %1304 = vmatpush.msra.mxu0 0.0
    %1305 = vmatpush.msra.mxu0 0.0
    %1306 = vmatpush.msra.mxu0 0.0
    %1307 = vmatpush.msra.mxu0 0.0
    %1308 = vmatpush.msra.mxu0 0.0
    %1309 = vmatpush.msra.mxu0 0.0
    %1310 = vmatpush.msra.mxu0 0.0
    %1311 = vmatpush.msra.mxu0 0.0
    %1312 = vmatpush.msra.mxu0 %v1291
    %1313 = vmatmul.f32.gmra.mxu0 %v1295
    %v1314 = vpop.f32.mrf.mxu0
    %v1315 = vadd.f32 0.0, %v1314
    %1316 = vdwg.mxu0
    %v1317 = vadd.f32 %v1274, %v1315
    %vm1318 = vcmask 64516
    %v1319 = vsel %vm1318, %v1228, -inf
    %v1320 = vsel %vm628, %v1229, -inf
    %v1321 = vmax.f32 %v1319, %v1320
    %v1322 = vrot.slane %v1321, 4
    %v1323 = vmax.f32 %v1321, %v1322
    %v1324 = vrot.slane %v1323, 2
    %v1325 = vmax.f32 %v1323, %v1324
    %v1326 = vrot.slane %v1325, 1
    %v1327 = vmax.f32 %v1325, %v1326
    %v1328 = vsel %vm1318, %v1230, -inf
    %v1329 = vsel %vm628, %v1231, -inf
    %v1330 = vmax.f32 %v1328, %v1329
    %v1331 = vrot.slane %v1330, 4
    %v1332 = vmax.f32 %v1330, %v1331
    %v1333 = vrot.slane %v1332, 2
    %v1334 = vmax.f32 %v1332, %v1333
    %v1335 = vrot.slane %v1334, 1
    %v1336 = vmax.f32 %v1334, %v1335
    %s1337 = scalar_lea.vmem [#allocation3], 64
    %v1338 = vld [vmem:[%s1337] sm:$0xff]
    %v1341 = vsel %vm511, %v1336, %v1327
    %v1342 = vsel %vm513, %v1341, 0
    %1344 = vmatpush.msra.mxu0 0.0
    %1345 = vmatpush.msra.mxu0 0.0
    %1346 = vmatpush.msra.mxu0 0.0
    %1347 = vmatpush.msra.mxu0 0.0
    %1348 = vmatpush.msra.mxu0 0.0
    %1349 = vmatpush.msra.mxu0 0.0
    %1350 = vmatpush.msra.mxu0 0.0
    %1351 = vmatpush.msra.mxu0 0.0
    %1352 = vmatpush.msra.mxu0 0.0
    %1353 = vmatpush.msra.mxu0 0.0
    %1354 = vmatpush.msra.mxu0 0.0
    %1355 = vmatpush.msra.mxu0 0.0
    %1356 = vmatpush.msra.mxu0 0.0
    %1357 = vmatpush.msra.mxu0 0.0
    %1358 = vmatpush.msra.mxu0 0.0
    %1359 = vmatpush.msra.mxu0 %v1338
    %1360 = vmatmul.f32.gmra.mxu0 %v1342
    %v1361 = vpop.f32.mrf.mxu0
    %v1362 = vadd.f32 0.0, %v1361
    %1363 = vdwg.mxu0
    %v1364 = vadd.f32 %v1317, %v1362
    %v1365 = vsel %vm626, %v1228, -inf
    %v1366 = vsel %vm493, %v1229, -inf
    %v1367 = vmax.f32 %v1365, %v1366
    %v1368 = vrot.slane %v1367, 4
    %v1369 = vmax.f32 %v1367, %v1368
    %v1370 = vrot.slane %v1369, 2
    %v1371 = vmax.f32 %v1369, %v1370
    %v1372 = vrot.slane %v1371, 1
    %v1373 = vmax.f32 %v1371, %v1372
    %v1374 = vsel %vm626, %v1230, -inf
    %v1375 = vsel %vm493, %v1231, -inf
    %v1376 = vmax.f32 %v1374, %v1375
    %v1377 = vrot.slane %v1376, 4
    %v1378 = vmax.f32 %v1376, %v1377
    %v1379 = vrot.slane %v1378, 2
    %v1380 = vmax.f32 %v1378, %v1379
    %v1381 = vrot.slane %v1380, 1
    %v1382 = vmax.f32 %v1380, %v1381
    %s1383 = scalar_lea.vmem [#allocation3], 72
    %v1384 = vld [vmem:[%s1383] sm:$0xff]
    %v1387 = vsel %vm511, %v1382, %v1373
    %v1388 = vsel %vm513, %v1387, 0
    %1390 = vmatpush.msra.mxu0 0.0
    %1391 = vmatpush.msra.mxu0 0.0
    %1392 = vmatpush.msra.mxu0 0.0
    %1393 = vmatpush.msra.mxu0 0.0
    %1394 = vmatpush.msra.mxu0 0.0
    %1395 = vmatpush.msra.mxu0 0.0
    %1396 = vmatpush.msra.mxu0 0.0
    %1397 = vmatpush.msra.mxu0 0.0
    %1398 = vmatpush.msra.mxu0 0.0
    %1399 = vmatpush.msra.mxu0 0.0
    %1400 = vmatpush.msra.mxu0 0.0
    %1401 = vmatpush.msra.mxu0 0.0
    %1402 = vmatpush.msra.mxu0 0.0
    %1403 = vmatpush.msra.mxu0 0.0
    %1404 = vmatpush.msra.mxu0 0.0
    %1405 = vmatpush.msra.mxu0 %v1384
    %1406 = vmatmul.f32.gmra.mxu0 %v1388
    %v1407 = vpop.f32.mrf.mxu0
    %v1408 = vadd.f32 0.0, %v1407
    %1409 = vdwg.mxu0
    %v1410 = vadd.f32 %v1364, %v1408
    %v1411 = vld [vmem:[%s7] sm:$0x1]
    %v1413 = vperm.slane %v1411, 0
    %v1415 = vmul.f32 %v1410, %v1413
    %vm1416 = vcmask 254976
    %v1417 = vsel %vm1416, %v1415, 0.0
    %1418 = vadd.xlane.f32.xlu0 %v1417
    %v1419 = vpop.xlane.xlu0 %1418
    %v1420 = vld [vmem:[#allocation2] sm:$0x1]
    %v1422 = vperm.slane %v1420, 0
    %v1424 = vadd.f32 %v1419, %v1422
    %v1425 = vsub.f32 0.0, %v1424
    %v1426 = vmul.f32 %v1425, 1.442695
    %v1427 = vpow.pop %v1426
    %v1428 = vadd.f32 %v1427, 1.0
    %v1429 = vrcp.pop %v1428
    %v1430 = vmul.f32 %v1428, %v1429
    %v1431 = vsub.f32 1.0, %v1430
    %v1432 = vmul.f32 %v1429, %v1431
    %v1433 = vadd.f32 %v1429, %v1432
    %vm1434 = vweird.f32 %v1428
    %vm1435 = vweird.f32 %v1429
    %vm1436 = vmor %vm1434, %vm1435
    %v1437 = vsel %vm1436, %v1429, %v1433
    %v1438 = vand.u32 2147483647, %v1428
    %vm1439 = vcmp.eq.f32.partialorder %v1438, 8.507059e+37
    %v1440 = vand.u32 %v1428, 2147483648
    %v1441 = vor.u32 1.1754944e-38, %v1440
    %v1442 = vsel %vm1439, %v1441, %v1437
    %v1443 = vmul.f32 1.0, %v1442
    %vm1444 = vcmask 1024
    %1445 = vst.msk [vmem:[%s9] sm:$0x3] %vm1444, %v1443
    // Predicated region
    $region42: #{cold_cnn_forward.1} parent=1 // pred_check
      _
    $region43: #{cold_cnn_forward.1} parent=1 // pred_check_branch
      %1447 = sbr.rel (0) target = $region45
    $region44: #{cold_cnn_forward.1} parent=1 // pred_region
      _
    $region45: #{cold_cnn_forward.1} parent=1 // pred_fallthru
      _
    // Predicated region
    $region46: #{cold_cnn_forward.1} parent=1 // pred_check
      _
    $region47: #{cold_cnn_forward.1} parent=1 // pred_check_branch
      %1449 = sbr.rel (0) target = $region49
    $region48: #{cold_cnn_forward.1} parent=1 // pred_region
      _
    $region49: #{cold_cnn_forward.1} parent=1 // pred_fallthru
      _
    %1450 = vsyncpa [#allocation4], 1

</llo_original>
